<compile_context>
chip_gen: v7x
topology: tpu7x:2x2x1
jax: 0.10.0
libtpu: 0.0.40
codegen_flags: <defaults>
</compile_context>

<pallas_src>
import functools
from itertools import product
from math import sqrt

import jax
import jax.numpy as jnp
from jax.experimental import pallas as pl
from jax.experimental.pallas import tpu as pltpu

# ---- synthetic config -------------------------------------------------------
NUM_CLASSES = 5
MASK_DIM = 8
ASPECT_RATIOS = [[1.0, 0.5, 2.0]]
SCALES = [24.0]
MAX_SIZE = 128.0
NUM_PRIORS = sum(len(a) * len(SCALES) for a in ASPECT_RATIOS)  # 3
HEAD_CHANNELS = 32

N_BBOX = NUM_PRIORS * 4             # 12
N_CONF = NUM_PRIORS * NUM_CLASSES   # 15
N_MASK = NUM_PRIORS * MASK_DIM      # 24
N_HEAD = N_BBOX + N_CONF + N_MASK   # 51
COUT_PAD = 128                      # lane-dense output slab width (unmasked stores)


# ---- fused upfeature + heads kernel -----------------------------------------
def _fused_head_kernel(x_ref, wu_ref, bu_ref, wh_ref, bh_ref, o_ref,
                       xpad_ref, upad_ref, *, B, H, W, Cin, Cup,
                       n_bbox, n_conf, n_mask):
    # x_ref : (B, H, W, Cin)        NHWC input block (whole batch, batch folded into M)
    # wu_ref: (9*Cin, Cup)          im2col-folded upfeature weight
    # bu_ref: (1, Cup)
    # wh_ref: (9*Cup, COUT_PAD)     im2col-folded, Cout-concatenated+padded head weight
    # bh_ref: (1, COUT_PAD)
    # o_ref : (B*H*W, COUT_PAD)     lane-dense fused output slab
    # xpad_ref / upad_ref : VMEM scratch, spatially zero-padded (halo = conv padding=1)
    M = B * H * W

    def im2col(p_ref, C):
        # 9 shifted HxW views of the padded image -> one (M, 9*C) patch matrix.
        taps = [p_ref[:, dy:dy + H, dx:dx + W, :].reshape(M, C)
                for dy in range(3) for dx in range(3)]
        return jnp.concatenate(taps, axis=-1)

    # -- stage 0: zero-pad the input inside VMEM (replaces wrapper-side jnp.pad)
    xpad_ref[...] = jnp.zeros_like(xpad_ref)
    xpad_ref[:, 1:H + 1, 1:W + 1, :] = x_ref[...]

    # -- stage 1: upfeature 3x3 conv + ReLU as a single K = 9*Cin matmul -------
    u = jnp.dot(im2col(xpad_ref, Cin), wu_ref[...],
                preferred_element_type=jnp.float32)
    u = jnp.maximum(u + bu_ref[...], 0.0)                 # (M, Cup), stays in VMEM

    # -- stage 2: re-pad the activation in VMEM (never written to HBM) ---------
    upad_ref[...] = jnp.zeros_like(upad_ref)
    upad_ref[:, 1:H + 1, 1:W + 1, :] = u.reshape(B, H, W, Cup)

    # -- stage 3: fused bbox|conf|mask heads, one K = 9*Cup matmul -------------
    y = jnp.dot(im2col(upad_ref, Cup), wh_ref[...],
                preferred_element_type=jnp.float32) + bh_ref[...]

    # tanh only on the mask-coefficient channel range (lincomb coeff activation)
    ch = jax.lax.broadcasted_iota(jnp.int32, y.shape, 1)
    lo = n_bbox + n_conf
    is_mask = (ch >= lo) & (ch < lo + n_mask)
    o_ref[...] = jnp.where(is_mask, jnp.tanh(y), y)


def _fold_conv_weight(w_hwio):
    kh, kw, cin, cout = w_hwio.shape
    return w_hwio.reshape(kh * kw * cin, cout)


# ---- priors (pure host-side enumeration, same as the torch make_priors) -----
def make_priors(conv_h, conv_w):
    # TODO(synk): prior caching / device-migration logic from the reference is
    # stateless here (priors recomputed each call); values are identical.
    prior_data = []
    for j, i in product(range(conv_h), range(conv_w)):
        x = (i + 0.5) / conv_w
        y = (j + 0.5) / conv_h
        for ars in ASPECT_RATIOS:
            for scale in SCALES:
                for ar in ars:
                    ar = sqrt(ar)                      # preapply_sqrt = False
                    w = scale * ar / MAX_SIZE          # use_pixel_scales = True
                    h = scale / ar / MAX_SIZE
                    prior_data += [x, y, w, h]
    return jnp.asarray(prior_data, jnp.float32).reshape(-1, 4)


# ---- deterministic parameter init ------------------------------------------
def init_params(key, in_channels):
    ks = jax.random.split(key, 4)

    def conv_p(k, cin, cout):
        kw, kb = jax.random.split(k)
        fan_in = float(cin * 9)
        w = jax.random.normal(kw, (3, 3, cin, cout), jnp.float32) / jnp.sqrt(fan_in)
        b = 0.01 * jax.random.normal(kb, (cout,), jnp.float32)
        return w, b

    return {
        "upfeature": conv_p(ks[0], in_channels, HEAD_CHANNELS),
        "bbox": conv_p(ks[1], HEAD_CHANNELS, NUM_PRIORS * 4),
        "conf": conv_p(ks[2], HEAD_CHANNELS, NUM_PRIORS * NUM_CLASSES),
        "mask": conv_p(ks[3], HEAD_CHANNELS, NUM_PRIORS * MASK_DIM),
    }


# ---- PredictionModule.forward ------------------------------------------------
def prediction_module_forward(params, x_nchw):
    B, Cin, conv_h, conv_w = x_nchw.shape
    H, W = conv_h, conv_w
    x = jnp.transpose(x_nchw, (0, 2, 3, 1))                       # NCHW -> NHWC

    wu, bu = params["upfeature"]
    wb, bb = params["bbox"]
    wc, bc = params["conf"]
    wm, bm = params["mask"]
    Cup = wu.shape[-1]

    # Fold weights once (in a real model this would be hoisted to init time):
    #   upfeature -> (9*Cin, Cup); heads concatenated along Cout, padded to 128.
    wu_m = _fold_conv_weight(wu)
    bu_m = bu.reshape(1, Cup)
    wh = jnp.concatenate([wb, wc, wm], axis=-1)                    # (3,3,Cup,51)
    wh = jnp.pad(wh, ((0, 0), (0, 0), (0, 0), (0, COUT_PAD - N_HEAD)))
    wh_m = _fold_conv_weight(wh)                                   # (9*Cup, 128)
    bh_m = jnp.pad(jnp.concatenate([bb, bc, bm]),
                   (0, COUT_PAD - N_HEAD)).reshape(1, COUT_PAD)

    kern = functools.partial(_fused_head_kernel, B=B, H=H, W=W, Cin=Cin, Cup=Cup,
                             n_bbox=N_BBOX, n_conf=N_CONF, n_mask=N_MASK)

    y = pl.pallas_call(
        kern,
        out_shape=jax.ShapeDtypeStruct((B * H * W, COUT_PAD), jnp.float32),
        grid_spec=pltpu.PrefetchScalarGridSpec(
            num_scalar_prefetch=0,
            grid=(1,),
            in_specs=[
                pl.BlockSpec((B, H, W, Cin), lambda i: (0, 0, 0, 0)),
                pl.BlockSpec((9 * Cin, Cup), lambda i: (0, 0)),
                pl.BlockSpec((1, Cup), lambda i: (0, 0)),
                pl.BlockSpec((9 * Cup, COUT_PAD), lambda i: (0, 0)),
                pl.BlockSpec((1, COUT_PAD), lambda i: (0, 0)),
            ],
            out_specs=pl.BlockSpec((B * H * W, COUT_PAD), lambda i: (0, 0)),
            scratch_shapes=[
                pltpu.VMEM((B, H + 2, W + 2, Cin), jnp.float32),
                pltpu.VMEM((B, H + 2, W + 2, Cup), jnp.float32),
            ],
        ),
        compiler_params=pltpu.CompilerParams(
            dimension_semantics=("arbitrary",)),
    )(x, wu_m, bu_m, wh_m, bh_m)

    y = y.reshape(B, H, W, COUT_PAD)
    loc = y[..., :N_BBOX].reshape(B, H * W * NUM_PRIORS, 4)
    conf = y[..., N_BBOX:N_BBOX + N_CONF].reshape(B, H * W * NUM_PRIORS, NUM_CLASSES)
    mask = y[..., N_BBOX + N_CONF:N_HEAD].reshape(B, H * W * NUM_PRIORS, MASK_DIM)
    priors = make_priors(H, W)
    return {"loc": loc, "conf": conf, "mask": mask, "priors": priors}


# ---- reference (XLA conv) for verification ----------------------------------
def _ref_conv(x_nhwc, w, b, act):
    y = jax.lax.conv_general_dilated(
        x_nhwc, w, window_strides=(1, 1), padding="SAME",
        dimension_numbers=("NHWC", "HWIO", "NHWC")) + b
    if act == "relu":
        y = jnp.maximum(y, 0.0)
    elif act == "tanh":
        y = jnp.tanh(y)
    return y


if __name__ == "__main__":
    key = jax.random.PRNGKey(0)
    kx, kp = jax.random.split(key)
    B, Cin, H, W = 2, 16, 8, 8
    x = jax.random.normal(kx, (B, Cin, H, W), jnp.float32)
    params = init_params(kp, Cin)

    preds = prediction_module_forward(params, x)
    jax.block_until_ready(preds)

    # sanity-check the fused Pallas kernel against the XLA reference
    xh = jnp.transpose(x, (0, 2, 3, 1))
    u = _ref_conv(xh, *params["upfeature"], "relu")
    loc_ref = _ref_conv(u, *params["bbox"], "none").reshape(B, -1, 4)
    conf_ref = _ref_conv(u, *params["conf"], "none").reshape(B, -1, NUM_CLASSES)
    mask_ref = _ref_conv(u, *params["mask"], "tanh").reshape(B, -1, MASK_DIM)
    assert preds["loc"].shape == (B, H * W * NUM_PRIORS, 4)
    assert preds["conf"].shape == (B, H * W * NUM_PRIORS, NUM_CLASSES)
    assert preds["mask"].shape == (B, H * W * NUM_PRIORS, MASK_DIM)
    assert preds["priors"].shape == (H * W * NUM_PRIORS, 4)
    assert jnp.allclose(preds["loc"], loc_ref, atol=1e-3, rtol=1e-3)
    assert jnp.allclose(preds["conf"], conf_ref, atol=1e-3, rtol=1e-3)
    assert jnp.allclose(preds["mask"], mask_ref, atol=1e-3, rtol=1e-3)

    print("KERNEL_OK")
</pallas_src>

<mosaic_0001>
module attributes {stable_mosaic.version = 11 : i64} {
  func.func @_fused_head_kernel(%arg0: i32, %arg1: memref<2x8x8x16xf32, #tpu.memory_space<vmem>>, %arg2: memref<144x32xf32, #tpu.memory_space<vmem>>, %arg3: memref<1x32xf32, #tpu.memory_space<vmem>>, %arg4: memref<288x128xf32, #tpu.memory_space<vmem>>, %arg5: memref<1x128xf32, #tpu.memory_space<vmem>>, %arg6: memref<128x128xf32, #tpu.memory_space<vmem>>, %arg7: memref<2x10x10x16xf32, #tpu.memory_space<vmem>>, %arg8: memref<2x10x10x32xf32, #tpu.memory_space<vmem>>) attributes {dimension_semantics = [#tpu.dimension_semantics<arbitrary>], iteration_bounds = array<i64: 1>, scalar_prefetch = 0 : i64, scratch_operands = 2 : i64, tpu.core_type = #tpu.core_type<tc>, window_params = [{pipeline_mode = #tpu.pipeline_mode<synchronous>, transform_indices = @transform_0, window_bounds = array<i64: 2, 8, 8, 16>}, {pipeline_mode = #tpu.pipeline_mode<synchronous>, transform_indices = @transform_1, window_bounds = array<i64: 144, 32>}, {pipeline_mode = #tpu.pipeline_mode<synchronous>, transform_indices = @transform_2, window_bounds = array<i64: 1, 32>}, {pipeline_mode = #tpu.pipeline_mode<synchronous>, transform_indices = @transform_3, window_bounds = array<i64: 288, 128>}, {pipeline_mode = #tpu.pipeline_mode<synchronous>, transform_indices = @transform_4, window_bounds = array<i64: 1, 128>}, {pipeline_mode = #tpu.pipeline_mode<synchronous>, transform_indices = @transform_5, window_bounds = array<i64: 128, 128>}]} {
    %cst = arith.constant 0.000000e+00 : f32
    %0 = vector.broadcast %cst : f32 to vector<2x10x10x16xf32>
    %c0 = arith.constant 0 : index
    %c0_0 = arith.constant 0 : index
    %c0_1 = arith.constant 0 : index
    %c0_2 = arith.constant 0 : index
    %1 = vector.load %arg7[%c0, %c0_0, %c0_1, %c0_2] : memref<2x10x10x16xf32, #tpu.memory_space<vmem>>, vector<2x10x10x16xf32>
    tpu.vector_store %arg7[%c0, %c0_0, %c0_1, %c0_2], %0 {strides = array<i32>} : memref<2x10x10x16xf32, #tpu.memory_space<vmem>>, vector<2x10x10x16xf32>,
    %c0_3 = arith.constant 0 : index
    %c0_4 = arith.constant 0 : index
    %c0_5 = arith.constant 0 : index
    %c0_6 = arith.constant 0 : index
    %2 = vector.load %arg1[%c0_3, %c0_4, %c0_5, %c0_6] : memref<2x8x8x16xf32, #tpu.memory_space<vmem>>, vector<2x8x8x16xf32>
    %c0_7 = arith.constant 0 : index
    %c1 = arith.constant 1 : index
    %c1_8 = arith.constant 1 : index
    %c0_9 = arith.constant 0 : index
    %3 = vector.load %arg7[%c0_7, %c1, %c1_8, %c0_9] : memref<2x10x10x16xf32, #tpu.memory_space<vmem>>, vector<2x8x8x16xf32>
    tpu.vector_store %arg7[%c0_7, %c1, %c1_8, %c0_9], %2 {strides = array<i32>} : memref<2x10x10x16xf32, #tpu.memory_space<vmem>>, vector<2x8x8x16xf32>,
    %c0_10 = arith.constant 0 : index
    %c0_11 = arith.constant 0 : index
    %c0_12 = arith.constant 0 : index
    %c0_13 = arith.constant 0 : index
    %4 = vector.load %arg7[%c0_10, %c0_11, %c0_12, %c0_13] : memref<2x10x10x16xf32, #tpu.memory_space<vmem>>, vector<2x8x8x16xf32>
    %5 = vector.shape_cast %4 : vector<2x8x8x16xf32> to vector<128x16xf32>
    %c0_14 = arith.constant 0 : index
    %c0_15 = arith.constant 0 : index
    %c1_16 = arith.constant 1 : index
    %c0_17 = arith.constant 0 : index
    %6 = vector.load %arg7[%c0_14, %c0_15, %c1_16, %c0_17] : memref<2x10x10x16xf32, #tpu.memory_space<vmem>>, vector<2x8x8x16xf32>
    %7 = vector.shape_cast %6 : vector<2x8x8x16xf32> to vector<128x16xf32>
    %c0_18 = arith.constant 0 : index
    %c0_19 = arith.constant 0 : index
    %c2 = arith.constant 2 : index
    %c0_20 = arith.constant 0 : index
    %8 = vector.load %arg7[%c0_18, %c0_19, %c2, %c0_20] : memref<2x10x10x16xf32, #tpu.memory_space<vmem>>, vector<2x8x8x16xf32>
    %9 = vector.shape_cast %8 : vector<2x8x8x16xf32> to vector<128x16xf32>
    %c0_21 = arith.constant 0 : index
    %c1_22 = arith.constant 1 : index
    %c0_23 = arith.constant 0 : index
    %c0_24 = arith.constant 0 : index
    %10 = vector.load %arg7[%c0_21, %c1_22, %c0_23, %c0_24] : memref<2x10x10x16xf32, #tpu.memory_space<vmem>>, vector<2x8x8x16xf32>
    %11 = vector.shape_cast %10 : vector<2x8x8x16xf32> to vector<128x16xf32>
    %c0_25 = arith.constant 0 : index
    %c1_26 = arith.constant 1 : index
    %c1_27 = arith.constant 1 : index
    %c0_28 = arith.constant 0 : index
    %12 = vector.load %arg7[%c0_25, %c1_26, %c1_27, %c0_28] : memref<2x10x10x16xf32, #tpu.memory_space<vmem>>, vector<2x8x8x16xf32>
    %13 = vector.shape_cast %12 : vector<2x8x8x16xf32> to vector<128x16xf32>
    %c0_29 = arith.constant 0 : index
    %c1_30 = arith.constant 1 : index
    %c2_31 = arith.constant 2 : index
    %c0_32 = arith.constant 0 : index
    %14 = vector.load %arg7[%c0_29, %c1_30, %c2_31, %c0_32] : memref<2x10x10x16xf32, #tpu.memory_space<vmem>>, vector<2x8x8x16xf32>
    %15 = vector.shape_cast %14 : vector<2x8x8x16xf32> to vector<128x16xf32>
    %c0_33 = arith.constant 0 : index
    %c2_34 = arith.constant 2 : index
    %c0_35 = arith.constant 0 : index
    %c0_36 = arith.constant 0 : index
    %16 = vector.load %arg7[%c0_33, %c2_34, %c0_35, %c0_36] : memref<2x10x10x16xf32, #tpu.memory_space<vmem>>, vector<2x8x8x16xf32>
    %17 = vector.shape_cast %16 : vector<2x8x8x16xf32> to vector<128x16xf32>
    %c0_37 = arith.constant 0 : index
    %c2_38 = arith.constant 2 : index
    %c1_39 = arith.constant 1 : index
    %c0_40 = arith.constant 0 : index
    %18 = vector.load %arg7[%c0_37, %c2_38, %c1_39, %c0_40] : memref<2x10x10x16xf32, #tpu.memory_space<vmem>>, vector<2x8x8x16xf32>
    %19 = vector.shape_cast %18 : vector<2x8x8x16xf32> to vector<128x16xf32>
    %c0_41 = arith.constant 0 : index
    %c2_42 = arith.constant 2 : index
    %c2_43 = arith.constant 2 : index
    %c0_44 = arith.constant 0 : index
    %20 = vector.load %arg7[%c0_41, %c2_42, %c2_43, %c0_44] : memref<2x10x10x16xf32, #tpu.memory_space<vmem>>, vector<2x8x8x16xf32>
    %21 = vector.shape_cast %20 : vector<2x8x8x16xf32> to vector<128x16xf32>
    %22 = tpu.concatenate %5, %7, %9, %11, %13, %15, %17, %19, %21 in 1 : vector<128x16xf32>, vector<128x16xf32>, vector<128x16xf32>, vector<128x16xf32>, vector<128x16xf32>, vector<128x16xf32>, vector<128x16xf32>, vector<128x16xf32>, vector<128x16xf32> -> vector<128x144xf32>
    %c0_45 = arith.constant 0 : index
    %c0_46 = arith.constant 0 : index
    %23 = vector.load %arg2[%c0_45, %c0_46] : memref<144x32xf32, #tpu.memory_space<vmem>>, vector<144x32xf32>
    %cst_47 = arith.constant dense<0.000000e+00> : vector<128x32xf32>
    %24 = tpu.matmul %22, %23, %cst_47 {dimension_numbers = #tpu.dot_dimension_numbers<[1], [0], [0], [1], [0, 0, 1, 1], [], []>} : vector<128x144xf32>, vector<144x32xf32>, vector<128x32xf32> -> vector<128x32xf32>
    %c0_48 = arith.constant 0 : index
    %c0_49 = arith.constant 0 : index
    %25 = vector.load %arg3[%c0_48, %c0_49] : memref<1x32xf32, #tpu.memory_space<vmem>>, vector<1x32xf32>
    %26 = vector.broadcast %25 : vector<1x32xf32> to vector<128x32xf32>
    %27 = arith.addf %24, %26 : vector<128x32xf32>
    %cst_50 = arith.constant 0.000000e+00 : f32
    %28 = vector.broadcast %cst_50 : f32 to vector<128x32xf32>
    %29 = arith.maximumf %27, %28 : vector<128x32xf32>
    %cst_51 = arith.constant 0.000000e+00 : f32
    %30 = vector.broadcast %cst_51 : f32 to vector<2x10x10x32xf32>
    %c0_52 = arith.constant 0 : index
    %c0_53 = arith.constant 0 : index
    %c0_54 = arith.constant 0 : index
    %c0_55 = arith.constant 0 : index
    %31 = vector.load %arg8[%c0_52, %c0_53, %c0_54, %c0_55] : memref<2x10x10x32xf32, #tpu.memory_space<vmem>>, vector<2x10x10x32xf32>
    tpu.vector_store %arg8[%c0_52, %c0_53, %c0_54, %c0_55], %30 {strides = array<i32>} : memref<2x10x10x32xf32, #tpu.memory_space<vmem>>, vector<2x10x10x32xf32>,
    %32 = vector.shape_cast %29 : vector<128x32xf32> to vector<2x8x8x32xf32>
    %c0_56 = arith.constant 0 : index
    %c1_57 = arith.constant 1 : index
    %c1_58 = arith.constant 1 : index
    %c0_59 = arith.constant 0 : index
    %33 = vector.load %arg8[%c0_56, %c1_57, %c1_58, %c0_59] : memref<2x10x10x32xf32, #tpu.memory_space<vmem>>, vector<2x8x8x32xf32>
    tpu.vector_store %arg8[%c0_56, %c1_57, %c1_58, %c0_59], %32 {strides = array<i32>} : memref<2x10x10x32xf32, #tpu.memory_space<vmem>>, vector<2x8x8x32xf32>,
    %c0_60 = arith.constant 0 : index
    %c0_61 = arith.constant 0 : index
    %c0_62 = arith.constant 0 : index
    %c0_63 = arith.constant 0 : index
    %34 = vector.load %arg8[%c0_60, %c0_61, %c0_62, %c0_63] : memref<2x10x10x32xf32, #tpu.memory_space<vmem>>, vector<2x8x8x32xf32>
    %35 = vector.shape_cast %34 : vector<2x8x8x32xf32> to vector<128x32xf32>
    %c0_64 = arith.constant 0 : index
    %c0_65 = arith.constant 0 : index
    %c1_66 = arith.constant 1 : index
    %c0_67 = arith.constant 0 : index
    %36 = vector.load %arg8[%c0_64, %c0_65, %c1_66, %c0_67] : memref<2x10x10x32xf32, #tpu.memory_space<vmem>>, vector<2x8x8x32xf32>
    %37 = vector.shape_cast %36 : vector<2x8x8x32xf32> to vector<128x32xf32>
    %c0_68 = arith.constant 0 : index
    %c0_69 = arith.constant 0 : index
    %c2_70 = arith.constant 2 : index
    %c0_71 = arith.constant 0 : index
    %38 = vector.load %arg8[%c0_68, %c0_69, %c2_70, %c0_71] : memref<2x10x10x32xf32, #tpu.memory_space<vmem>>, vector<2x8x8x32xf32>
    %39 = vector.shape_cast %38 : vector<2x8x8x32xf32> to vector<128x32xf32>
    %c0_72 = arith.constant 0 : index
    %c1_73 = arith.constant 1 : index
    %c0_74 = arith.constant 0 : index
    %c0_75 = arith.constant 0 : index
    %40 = vector.load %arg8[%c0_72, %c1_73, %c0_74, %c0_75] : memref<2x10x10x32xf32, #tpu.memory_space<vmem>>, vector<2x8x8x32xf32>
    %41 = vector.shape_cast %40 : vector<2x8x8x32xf32> to vector<128x32xf32>
    %c0_76 = arith.constant 0 : index
    %c1_77 = arith.constant 1 : index
    %c1_78 = arith.constant 1 : index
    %c0_79 = arith.constant 0 : index
    %42 = vector.load %arg8[%c0_76, %c1_77, %c1_78, %c0_79] : memref<2x10x10x32xf32, #tpu.memory_space<vmem>>, vector<2x8x8x32xf32>
    %43 = vector.shape_cast %42 : vector<2x8x8x32xf32> to vector<128x32xf32>
    %c0_80 = arith.constant 0 : index
    %c1_81 = arith.constant 1 : index
    %c2_82 = arith.constant 2 : index
    %c0_83 = arith.constant 0 : index
    %44 = vector.load %arg8[%c0_80, %c1_81, %c2_82, %c0_83] : memref<2x10x10x32xf32, #tpu.memory_space<vmem>>, vector<2x8x8x32xf32>
    %45 = vector.shape_cast %44 : vector<2x8x8x32xf32> to vector<128x32xf32>
    %c0_84 = arith.constant 0 : index
    %c2_85 = arith.constant 2 : index
    %c0_86 = arith.constant 0 : index
    %c0_87 = arith.constant 0 : index
    %46 = vector.load %arg8[%c0_84, %c2_85, %c0_86, %c0_87] : memref<2x10x10x32xf32, #tpu.memory_space<vmem>>, vector<2x8x8x32xf32>
    %47 = vector.shape_cast %46 : vector<2x8x8x32xf32> to vector<128x32xf32>
    %c0_88 = arith.constant 0 : index
    %c2_89 = arith.constant 2 : index
    %c1_90 = arith.constant 1 : index
    %c0_91 = arith.constant 0 : index
    %48 = vector.load %arg8[%c0_88, %c2_89, %c1_90, %c0_91] : memref<2x10x10x32xf32, #tpu.memory_space<vmem>>, vector<2x8x8x32xf32>
    %49 = vector.shape_cast %48 : vector<2x8x8x32xf32> to vector<128x32xf32>
    %c0_92 = arith.constant 0 : index
    %c2_93 = arith.constant 2 : index
    %c2_94 = arith.constant 2 : index
    %c0_95 = arith.constant 0 : index
    %50 = vector.load %arg8[%c0_92, %c2_93, %c2_94, %c0_95] : memref<2x10x10x32xf32, #tpu.memory_space<vmem>>, vector<2x8x8x32xf32>
    %51 = vector.shape_cast %50 : vector<2x8x8x32xf32> to vector<128x32xf32>
    %52 = tpu.concatenate %35, %37, %39, %41, %43, %45, %47, %49, %51 in 1 : vector<128x32xf32>, vector<128x32xf32>, vector<128x32xf32>, vector<128x32xf32>, vector<128x32xf32>, vector<128x32xf32>, vector<128x32xf32>, vector<128x32xf32>, vector<128x32xf32> -> vector<128x288xf32>
    %c0_96 = arith.constant 0 : index
    %c0_97 = arith.constant 0 : index
    %53 = vector.load %arg4[%c0_96, %c0_97] : memref<288x128xf32, #tpu.memory_space<vmem>>, vector<288x128xf32>
    %cst_98 = arith.constant dense<0.000000e+00> : vector<128x128xf32>
    %54 = tpu.matmul %52, %53, %cst_98 {dimension_numbers = #tpu.dot_dimension_numbers<[1], [0], [0], [1], [0, 0, 1, 1], [], []>} : vector<128x288xf32>, vector<288x128xf32>, vector<128x128xf32> -> vector<128x128xf32>
    %c0_99 = arith.constant 0 : index
    %c0_100 = arith.constant 0 : index
    %55 = vector.load %arg5[%c0_99, %c0_100] : memref<1x128xf32, #tpu.memory_space<vmem>>, vector<1x128xf32>
    %56 = vector.broadcast %55 : vector<1x128xf32> to vector<128x128xf32>
    %57 = arith.addf %54, %56 : vector<128x128xf32>
    %58 = tpu.iota {dimensions = array<i32: 1>} : vector<128x128xi32>
    %c27_i32 = arith.constant 27 : i32
    %59 = vector.broadcast %c27_i32 : i32 to vector<128x128xi32>
    %60 = arith.cmpi sge, %58, %59 : vector<128x128xi32>
    %c51_i32 = arith.constant 51 : i32
    %61 = vector.broadcast %c51_i32 : i32 to vector<128x128xi32>
    %62 = arith.cmpi slt, %58, %61 : vector<128x128xi32>
    %63 = arith.andi %60, %62 : vector<128x128xi1>
    %64 = math.tanh %57 : vector<128x128xf32>
    %65 = arith.select %63, %64, %57 : vector<128x128xi1>, vector<128x128xf32>
    %c0_101 = arith.constant 0 : index
    %c0_102 = arith.constant 0 : index
    %66 = vector.load %arg6[%c0_101, %c0_102] : memref<128x128xf32, #tpu.memory_space<vmem>>, vector<128x128xf32>
    tpu.vector_store %arg6[%c0_101, %c0_102], %65 {strides = array<i32>} : memref<128x128xf32, #tpu.memory_space<vmem>>, vector<128x128xf32>,
    return
  }
  func.func @transform_0(%arg0: i32) -> (i32, i32, i32, i32) {
    %c0_i32 = arith.constant 0 : i32
    %c0_i32_0 = arith.constant 0 : i32
    %c0_i32_1 = arith.constant 0 : i32
    %c0_i32_2 = arith.constant 0 : i32
    %c0_i32_3 = arith.constant 0 : i32
    return %c0_i32, %c0_i32_0, %c0_i32_1, %c0_i32_2 : i32, i32, i32, i32
  }
  func.func @transform_1(%arg0: i32) -> (i32, i32) {
    %c0_i32 = arith.constant 0 : i32
    %c0_i32_0 = arith.constant 0 : i32
    %c0_i32_1 = arith.constant 0 : i32
    return %c0_i32, %c0_i32_0 : i32, i32
  }
  func.func @transform_2(%arg0: i32) -> (i32, i32) {
    %c0_i32 = arith.constant 0 : i32
    %c0_i32_0 = arith.constant 0 : i32
    %c0_i32_1 = arith.constant 0 : i32
    return %c0_i32, %c0_i32_0 : i32, i32
  }
  func.func @transform_3(%arg0: i32) -> (i32, i32) {
    %c0_i32 = arith.constant 0 : i32
    %c0_i32_0 = arith.constant 0 : i32
    %c0_i32_1 = arith.constant 0 : i32
    return %c0_i32, %c0_i32_0 : i32, i32
  }
  func.func @transform_4(%arg0: i32) -> (i32, i32) {
    %c0_i32 = arith.constant 0 : i32
    %c0_i32_0 = arith.constant 0 : i32
    %c0_i32_1 = arith.constant 0 : i32
    return %c0_i32, %c0_i32_0 : i32, i32
  }
  func.func @transform_5(%arg0: i32) -> (i32, i32) {
    %c0_i32 = arith.constant 0 : i32
    %c0_i32_0 = arith.constant 0 : i32
    %c0_i32_1 = arith.constant 0 : i32
    return %c0_i32, %c0_i32_0 : i32, i32
  }
}

</mosaic_0001>

<llo_original>
// kernel: tpu_custom_call.1
$region0: #{tpu_custom_call.1}
  #allocation0 [shape = 'u32[]', space=smem, size = 0x4, offset = 0x4, fixed_abs, tag = 'smem constant byte address 0x4 - core index']
  #allocation1 [shape = 'u32[144,128]{1,0:T(1,128)}', space=vmem, size = 0x12000, scoped, tag = 'internal scratch']
  #allocation2 [shape = 'f32[2,10,10,16]{3,2,1,0:T(8,128)}', space=vmem, size = 0x28000, scoped, tag = 'scratch operand']
  #allocation3 [shape = 'f32[2,10,10,32]{3,2,1,0:T(8,128)}', space=vmem, size = 0x28000, scoped, tag = 'scratch operand']
  %s0 = inlined_call_operand.vmem [shape: f32[2,8,8,16], index: 0, kind: input, shape index: {}]
  %s1 = inlined_call_operand.vmem [shape: f32[144,32], index: 1, kind: input, shape index: {}]
  %s2 = inlined_call_operand.vmem [shape: f32[1,32], index: 2, kind: input, shape index: {}]
  %s3 = inlined_call_operand.hbm [shape: f32[288,128], index: 3, kind: input, shape index: {}]
  %s4 = inlined_call_operand.vmem [shape: f32[1,128], index: 4, kind: input, shape index: {}]
  %s5 = inlined_call_operand.hbm [shape: f32[128,128], index: 5, kind: output, shape index: {}]
  %s6 = sld [smem:[#allocation0]]
  $region34: #{tpu_custom_call.1} parent=0
    _
  %s8 = ssub.s32 1, %s6
  %s9 = scalar_select 0, %s8, %s6
  $region1: #{tpu_custom_call.1} parent=0
    #allocation4 [shape = 'u8[147456]{0}', space=vmem, size = 0x24000, scoped, tag = 'input window, operand 3, single buffered']
    #allocation5 [shape = 's32[1]{0}', space=sflag, size = 0x4, scoped, tag = 'scoped memory for tpu_custom_call.1']
    #allocation6 [shape = 's32[1]{0}', space=sflag, size = 0x4, scoped, tag = 'scoped memory for tpu_custom_call.1']
    #allocation7 [shape = 'u8[65536]{0}', space=vmem, size = 0x10000, scoped, tag = 'output window, operand 0, single buffered']
    %10 = vsyncpa [#allocation5], 0
    %11 = vsyncpa [#allocation6], 0
    // Predicated region
    $region2: #{tpu_custom_call.1} parent=1 // pred_check
      _
    $region3: #{tpu_custom_call.1} parent=1 // pred_check_branch
      %13 = sbr.rel (0) target = $region5
    $region4: #{tpu_custom_call.1} parent=1 // pred_region
      _
    $region5: #{tpu_custom_call.1} parent=1 // pred_fallthru
      _
    // Predicated region
    $region6: #{tpu_custom_call.1} parent=1 // pred_check
      _
    $region7: #{tpu_custom_call.1} parent=1 // pred_check_branch
      %15 = sbr.rel (0) target = $region9
    $region8: #{tpu_custom_call.1} parent=1 // pred_region
      _
    $region9: #{tpu_custom_call.1} parent=1 // pred_fallthru
      _
    // Predicated region
    $region10: #{tpu_custom_call.1} parent=1 // pred_check
      _
    $region11: #{tpu_custom_call.1} parent=1 // pred_check_branch
      %17 = sbr.rel (0) target = $region13
    $region12: #{tpu_custom_call.1} parent=1 // pred_region
      _
    $region13: #{tpu_custom_call.1} parent=1 // pred_fallthru
      _
    // Predicated region
    $region14: #{tpu_custom_call.1} parent=1 // pred_check
      _
    $region15: #{tpu_custom_call.1} parent=1 // pred_check_branch
      %19 = sbr.rel (0) target = $region17
    $region16: #{tpu_custom_call.1} parent=1 // pred_region
      %s21 = ssub.s32 4608, 4608
      %22 = vsyncadd [#allocation5], %s21
      %s23 = sshll.u32 [#allocation4], 4
      %s24 = int_to_ptr.vmem [resolvable:$true] %s23
      %29 = dma.hbm_to_vmem [thread:$0]  %s3, 4608, %s24, [#allocation5], 128, 128, 8
    $region17: #{tpu_custom_call.1} parent=1 // pred_fallthru
      _
    // Predicated region
    $region18: #{tpu_custom_call.1} parent=1 // pred_check
      _
    $region19: #{tpu_custom_call.1} parent=1 // pred_check_branch
      %31 = sbr.rel (0) target = $region21
    $region20: #{tpu_custom_call.1} parent=1 // pred_region
      _
    $region21: #{tpu_custom_call.1} parent=1 // pred_fallthru
      _
    // Predicated region
    $region22: #{tpu_custom_call.1} parent=1 // pred_check
      _
    $region23: #{tpu_custom_call.1} parent=1 // pred_check_branch
      %33 = sbr.rel (0) target = $region25
    $region24: #{tpu_custom_call.1} parent=1 // pred_region
      %34 = dma.done [#allocation5], 4608
    $region25: #{tpu_custom_call.1} parent=1 // pred_fallthru
      _
    %vm35 = vcmask 130048
    %36 = vst.msk [vmem:[#allocation2] sm:$0xff] %vm35, 0.0
    %vm37 = vcmask 123904
    %38 = vst.msk [vmem:[#allocation2 + $0x8] sm:$0x3] %vm37, 0.0
    %39 = vst.msk [vmem:[#allocation2 + $0x10] sm:$0xff] %vm35, 0.0
    %40 = vst.msk [vmem:[#allocation2 + $0x18] sm:$0x3] %vm37, 0.0
    %41 = vst.msk [vmem:[#allocation2 + $0x20] sm:$0xff] %vm35, 0.0
    %42 = vst.msk [vmem:[#allocation2 + $0x28] sm:$0x3] %vm37, 0.0
    %43 = vst.msk [vmem:[#allocation2 + $0x30] sm:$0xff] %vm35, 0.0
    %44 = vst.msk [vmem:[#allocation2 + $0x38] sm:$0x3] %vm37, 0.0
    %45 = vst.msk [vmem:[#allocation2 + $0x40] sm:$0xff] %vm35, 0.0
    %46 = vst.msk [vmem:[#allocation2 + $0x48] sm:$0x3] %vm37, 0.0
    %47 = vst.msk [vmem:[#allocation2 + $0x50] sm:$0xff] %vm35, 0.0
    %48 = vst.msk [vmem:[#allocation2 + $0x58] sm:$0x3] %vm37, 0.0
    %49 = vst.msk [vmem:[#allocation2 + $0x60] sm:$0xff] %vm35, 0.0
    %50 = vst.msk [vmem:[#allocation2 + $0x68] sm:$0x3] %vm37, 0.0
    %51 = vst.msk [vmem:[#allocation2 + $0x70] sm:$0xff] %vm35, 0.0
    %52 = vst.msk [vmem:[#allocation2 + $0x78] sm:$0x3] %vm37, 0.0
    %53 = vst.msk [vmem:[#allocation2 + $0x80] sm:$0xff] %vm35, 0.0
    %54 = vst.msk [vmem:[#allocation2 + $0x88] sm:$0x3] %vm37, 0.0
    %55 = vst.msk [vmem:[#allocation2 + $0x90] sm:$0xff] %vm35, 0.0
    %56 = vst.msk [vmem:[#allocation2 + $0x98] sm:$0x3] %vm37, 0.0
    %57 = vst.msk [vmem:[#allocation2 + $0xa0] sm:$0xff] %vm35, 0.0
    %58 = vst.msk [vmem:[#allocation2 + $0xa8] sm:$0x3] %vm37, 0.0
    %59 = vst.msk [vmem:[#allocation2 + $0xb0] sm:$0xff] %vm35, 0.0
    %60 = vst.msk [vmem:[#allocation2 + $0xb8] sm:$0x3] %vm37, 0.0
    %61 = vst.msk [vmem:[#allocation2 + $0xc0] sm:$0xff] %vm35, 0.0
    %62 = vst.msk [vmem:[#allocation2 + $0xc8] sm:$0x3] %vm37, 0.0
    %63 = vst.msk [vmem:[#allocation2 + $0xd0] sm:$0xff] %vm35, 0.0
    %64 = vst.msk [vmem:[#allocation2 + $0xd8] sm:$0x3] %vm37, 0.0
    %65 = vst.msk [vmem:[#allocation2 + $0xe0] sm:$0xff] %vm35, 0.0
    %66 = vst.msk [vmem:[#allocation2 + $0xe8] sm:$0x3] %vm37, 0.0
    %67 = vst.msk [vmem:[#allocation2 + $0xf0] sm:$0xff] %vm35, 0.0
    %68 = vst.msk [vmem:[#allocation2 + $0xf8] sm:$0x3] %vm37, 0.0
    %69 = vst.msk [vmem:[#allocation2 + $0x100] sm:$0xff] %vm35, 0.0
    %70 = vst.msk [vmem:[#allocation2 + $0x108] sm:$0x3] %vm37, 0.0
    %71 = vst.msk [vmem:[#allocation2 + $0x110] sm:$0xff] %vm35, 0.0
    %72 = vst.msk [vmem:[#allocation2 + $0x118] sm:$0x3] %vm37, 0.0
    %73 = vst.msk [vmem:[#allocation2 + $0x120] sm:$0xff] %vm35, 0.0
    %74 = vst.msk [vmem:[#allocation2 + $0x128] sm:$0x3] %vm37, 0.0
    %75 = vst.msk [vmem:[#allocation2 + $0x130] sm:$0xff] %vm35, 0.0
    %76 = vst.msk [vmem:[#allocation2 + $0x138] sm:$0x3] %vm37, 0.0
    %v77 = vld [vmem:[%s0] sm:$0xff]
    %v78 = vld [vmem:[%s0 + $0x8] sm:$0xff]
    %v79 = vld [vmem:[%s0 + $0x10] sm:$0xff]
    %v80 = vld [vmem:[%s0 + $0x18] sm:$0xff]
    %v81 = vld [vmem:[%s0 + $0x20] sm:$0xff]
    %v82 = vld [vmem:[%s0 + $0x28] sm:$0xff]
    %v83 = vld [vmem:[%s0 + $0x30] sm:$0xff]
    %v84 = vld [vmem:[%s0 + $0x38] sm:$0xff]
    %v85 = vld [vmem:[%s0 + $0x40] sm:$0xff]
    %v86 = vld [vmem:[%s0 + $0x48] sm:$0xff]
    %v87 = vld [vmem:[%s0 + $0x50] sm:$0xff]
    %v88 = vld [vmem:[%s0 + $0x58] sm:$0xff]
    %v89 = vld [vmem:[%s0 + $0x60] sm:$0xff]
    %v90 = vld [vmem:[%s0 + $0x68] sm:$0xff]
    %v91 = vld [vmem:[%s0 + $0x70] sm:$0xff]
    %v92 = vld [vmem:[%s0 + $0x78] sm:$0xff]
    %s93 = scalar_lea.vmem [#allocation2], 16
    %94 = vst.msk [vmem:[%s93 + $0x1] sm:$0xff] %vm35, %v77
    %95 = vst.msk [vmem:[%s93 + $0x11] sm:$0xff] %vm35, %v78
    %96 = vst.msk [vmem:[%s93 + $0x21] sm:$0xff] %vm35, %v79
    %97 = vst.msk [vmem:[%s93 + $0x31] sm:$0xff] %vm35, %v80
    %98 = vst.msk [vmem:[%s93 + $0x41] sm:$0xff] %vm35, %v81
    %99 = vst.msk [vmem:[%s93 + $0x51] sm:$0xff] %vm35, %v82
    %100 = vst.msk [vmem:[%s93 + $0x61] sm:$0xff] %vm35, %v83
    %101 = vst.msk [vmem:[%s93 + $0x71] sm:$0xff] %vm35, %v84
    %102 = vst.msk [vmem:[%s93 + $0xa1] sm:$0xff] %vm35, %v85
    %103 = vst.msk [vmem:[%s93 + $0xb1] sm:$0xff] %vm35, %v86
    %104 = vst.msk [vmem:[%s93 + $0xc1] sm:$0xff] %vm35, %v87
    %105 = vst.msk [vmem:[%s93 + $0xd1] sm:$0xff] %vm35, %v88
    %106 = vst.msk [vmem:[%s93 + $0xe1] sm:$0xff] %vm35, %v89
    %107 = vst.msk [vmem:[%s93 + $0xf1] sm:$0xff] %vm35, %v90
    %108 = vst.msk [vmem:[%s93 + $0x101] sm:$0xff] %vm35, %v91
    %109 = vst.msk [vmem:[%s93 + $0x111] sm:$0xff] %vm35, %v92
    %v110 = vld [vmem:[#allocation2] sm:$0xff]
    %v111 = vld [vmem:[#allocation2 + $0x10] sm:$0xff]
    %v112 = vld [vmem:[#allocation2 + $0x20] sm:$0xff]
    %v113 = vld [vmem:[#allocation2 + $0x30] sm:$0xff]
    %v114 = vld [vmem:[#allocation2 + $0x40] sm:$0xff]
    %v115 = vld [vmem:[#allocation2 + $0x50] sm:$0xff]
    %v116 = vld [vmem:[#allocation2 + $0x60] sm:$0xff]
    %v117 = vld [vmem:[#allocation2 + $0x70] sm:$0xff]
    %v118 = vld [vmem:[#allocation2 + $0xa0] sm:$0xff]
    %v119 = vld [vmem:[#allocation2 + $0xb0] sm:$0xff]
    %v120 = vld [vmem:[#allocation2 + $0xc0] sm:$0xff]
    %v121 = vld [vmem:[#allocation2 + $0xd0] sm:$0xff]
    %v122 = vld [vmem:[#allocation2 + $0xe0] sm:$0xff]
    %v123 = vld [vmem:[#allocation2 + $0xf0] sm:$0xff]
    %v124 = vld [vmem:[#allocation2 + $0x100] sm:$0xff]
    %v125 = vld [vmem:[#allocation2 + $0x110] sm:$0xff]
    %v126 = vld [vmem:[#allocation2 + $0x1] sm:$0xff]
    %v127 = vld [vmem:[#allocation2 + $0x11] sm:$0xff]
    %v128 = vld [vmem:[#allocation2 + $0x21] sm:$0xff]
    %v129 = vld [vmem:[#allocation2 + $0x31] sm:$0xff]
    %v130 = vld [vmem:[#allocation2 + $0x41] sm:$0xff]
    %v131 = vld [vmem:[#allocation2 + $0x51] sm:$0xff]
    %v132 = vld [vmem:[#allocation2 + $0x61] sm:$0xff]
    %v133 = vld [vmem:[#allocation2 + $0x71] sm:$0xff]
    %v134 = vld [vmem:[#allocation2 + $0xa1] sm:$0xff]
    %v135 = vld [vmem:[#allocation2 + $0xb1] sm:$0xff]
    %v136 = vld [vmem:[#allocation2 + $0xc1] sm:$0xff]
    %v137 = vld [vmem:[#allocation2 + $0xd1] sm:$0xff]
    %v138 = vld [vmem:[#allocation2 + $0xe1] sm:$0xff]
    %v139 = vld [vmem:[#allocation2 + $0xf1] sm:$0xff]
    %v140 = vld [vmem:[#allocation2 + $0x101] sm:$0xff]
    %v141 = vld [vmem:[#allocation2 + $0x111] sm:$0xff]
    %v142 = vld [vmem:[#allocation2 + $0x2] sm:$0xff]
    %v143 = vld [vmem:[#allocation2 + $0x12] sm:$0xff]
    %v144 = vld [vmem:[#allocation2 + $0x22] sm:$0xff]
    %v145 = vld [vmem:[#allocation2 + $0x32] sm:$0xff]
    %v146 = vld [vmem:[#allocation2 + $0x42] sm:$0xff]
    %v147 = vld [vmem:[#allocation2 + $0x52] sm:$0xff]
    %v148 = vld [vmem:[#allocation2 + $0x62] sm:$0xff]
    %v149 = vld [vmem:[#allocation2 + $0x72] sm:$0xff]
    %v150 = vld [vmem:[#allocation2 + $0xa2] sm:$0xff]
    %v151 = vld [vmem:[#allocation2 + $0xb2] sm:$0xff]
    %v152 = vld [vmem:[#allocation2 + $0xc2] sm:$0xff]
    %v153 = vld [vmem:[#allocation2 + $0xd2] sm:$0xff]
    %v154 = vld [vmem:[#allocation2 + $0xe2] sm:$0xff]
    %v155 = vld [vmem:[#allocation2 + $0xf2] sm:$0xff]
    %v156 = vld [vmem:[#allocation2 + $0x102] sm:$0xff]
    %v157 = vld [vmem:[#allocation2 + $0x112] sm:$0xff]
    %v158 = vld [vmem:[%s93] sm:$0xff]
    %v159 = vld [vmem:[%s93 + $0x10] sm:$0xff]
    %v160 = vld [vmem:[%s93 + $0x20] sm:$0xff]
    %v161 = vld [vmem:[%s93 + $0x30] sm:$0xff]
    %v162 = vld [vmem:[%s93 + $0x40] sm:$0xff]
    %v163 = vld [vmem:[%s93 + $0x50] sm:$0xff]
    %v164 = vld [vmem:[%s93 + $0x60] sm:$0xff]
    %v165 = vld [vmem:[%s93 + $0x70] sm:$0xff]
    %v166 = vld [vmem:[%s93 + $0xa0] sm:$0xff]
    %v167 = vld [vmem:[%s93 + $0xb0] sm:$0xff]
    %v168 = vld [vmem:[%s93 + $0xc0] sm:$0xff]
    %v169 = vld [vmem:[%s93 + $0xd0] sm:$0xff]
    %v170 = vld [vmem:[%s93 + $0xe0] sm:$0xff]
    %v171 = vld [vmem:[%s93 + $0xf0] sm:$0xff]
    %v172 = vld [vmem:[%s93 + $0x100] sm:$0xff]
    %v173 = vld [vmem:[%s93 + $0x110] sm:$0xff]
    %v174 = vld [vmem:[%s93 + $0x1] sm:$0xff]
    %v175 = vld [vmem:[%s93 + $0x11] sm:$0xff]
    %v176 = vld [vmem:[%s93 + $0x21] sm:$0xff]
    %v177 = vld [vmem:[%s93 + $0x31] sm:$0xff]
    %v178 = vld [vmem:[%s93 + $0x41] sm:$0xff]
    %v179 = vld [vmem:[%s93 + $0x51] sm:$0xff]
    %v180 = vld [vmem:[%s93 + $0x61] sm:$0xff]
    %v181 = vld [vmem:[%s93 + $0x71] sm:$0xff]
    %v182 = vld [vmem:[%s93 + $0xa1] sm:$0xff]
    %v183 = vld [vmem:[%s93 + $0xb1] sm:$0xff]
    %v184 = vld [vmem:[%s93 + $0xc1] sm:$0xff]
    %v185 = vld [vmem:[%s93 + $0xd1] sm:$0xff]
    %v186 = vld [vmem:[%s93 + $0xe1] sm:$0xff]
    %v187 = vld [vmem:[%s93 + $0xf1] sm:$0xff]
    %v188 = vld [vmem:[%s93 + $0x101] sm:$0xff]
    %v189 = vld [vmem:[%s93 + $0x111] sm:$0xff]
    %v190 = vld [vmem:[%s93 + $0x2] sm:$0xff]
    %v191 = vld [vmem:[%s93 + $0x12] sm:$0xff]
    %v192 = vld [vmem:[%s93 + $0x22] sm:$0xff]
    %v193 = vld [vmem:[%s93 + $0x32] sm:$0xff]
    %v194 = vld [vmem:[%s93 + $0x42] sm:$0xff]
    %v195 = vld [vmem:[%s93 + $0x52] sm:$0xff]
    %v196 = vld [vmem:[%s93 + $0x62] sm:$0xff]
    %v197 = vld [vmem:[%s93 + $0x72] sm:$0xff]
    %v198 = vld [vmem:[%s93 + $0xa2] sm:$0xff]
    %v199 = vld [vmem:[%s93 + $0xb2] sm:$0xff]
    %v200 = vld [vmem:[%s93 + $0xc2] sm:$0xff]
    %v201 = vld [vmem:[%s93 + $0xd2] sm:$0xff]
    %v202 = vld [vmem:[%s93 + $0xe2] sm:$0xff]
    %v203 = vld [vmem:[%s93 + $0xf2] sm:$0xff]
    %v204 = vld [vmem:[%s93 + $0x102] sm:$0xff]
    %v205 = vld [vmem:[%s93 + $0x112] sm:$0xff]
    %s206 = scalar_lea.vmem [#allocation2], 32
    %v207 = vld [vmem:[%s206] sm:$0xff]
    %v208 = vld [vmem:[%s206 + $0x10] sm:$0xff]
    %v209 = vld [vmem:[%s206 + $0x20] sm:$0xff]
    %v210 = vld [vmem:[%s206 + $0x30] sm:$0xff]
    %v211 = vld [vmem:[%s206 + $0x40] sm:$0xff]
    %v212 = vld [vmem:[%s206 + $0x50] sm:$0xff]
    %v213 = vld [vmem:[%s206 + $0x60] sm:$0xff]
    %v214 = vld [vmem:[%s206 + $0x70] sm:$0xff]
    %v215 = vld [vmem:[%s206 + $0xa0] sm:$0xff]
    %v216 = vld [vmem:[%s206 + $0xb0] sm:$0xff]
    %v217 = vld [vmem:[%s206 + $0xc0] sm:$0xff]
    %v218 = vld [vmem:[%s206 + $0xd0] sm:$0xff]
    %v219 = vld [vmem:[%s206 + $0xe0] sm:$0xff]
    %v220 = vld [vmem:[%s206 + $0xf0] sm:$0xff]
    %v221 = vld [vmem:[%s206 + $0x100] sm:$0xff]
    %v222 = vld [vmem:[%s206 + $0x110] sm:$0xff]
    %v223 = vld [vmem:[%s206 + $0x1] sm:$0xff]
    %v224 = vld [vmem:[%s206 + $0x11] sm:$0xff]
    %v225 = vld [vmem:[%s206 + $0x21] sm:$0xff]
    %v226 = vld [vmem:[%s206 + $0x31] sm:$0xff]
    %v227 = vld [vmem:[%s206 + $0x41] sm:$0xff]
    %v228 = vld [vmem:[%s206 + $0x51] sm:$0xff]
    %v229 = vld [vmem:[%s206 + $0x61] sm:$0xff]
    %v230 = vld [vmem:[%s206 + $0x71] sm:$0xff]
    %v231 = vld [vmem:[%s206 + $0xa1] sm:$0xff]
    %v232 = vld [vmem:[%s206 + $0xb1] sm:$0xff]
    %v233 = vld [vmem:[%s206 + $0xc1] sm:$0xff]
    %v234 = vld [vmem:[%s206 + $0xd1] sm:$0xff]
    %v235 = vld [vmem:[%s206 + $0xe1] sm:$0xff]
    %v236 = vld [vmem:[%s206 + $0xf1] sm:$0xff]
    %v237 = vld [vmem:[%s206 + $0x101] sm:$0xff]
    %v238 = vld [vmem:[%s206 + $0x111] sm:$0xff]
    %v239 = vld [vmem:[%s206 + $0x2] sm:$0xff]
    %v240 = vld [vmem:[%s206 + $0x12] sm:$0xff]
    %v241 = vld [vmem:[%s206 + $0x22] sm:$0xff]
    %v242 = vld [vmem:[%s206 + $0x32] sm:$0xff]
    %v243 = vld [vmem:[%s206 + $0x42] sm:$0xff]
    %v244 = vld [vmem:[%s206 + $0x52] sm:$0xff]
    %v245 = vld [vmem:[%s206 + $0x62] sm:$0xff]
    %v246 = vld [vmem:[%s206 + $0x72] sm:$0xff]
    %v247 = vld [vmem:[%s206 + $0xa2] sm:$0xff]
    %v248 = vld [vmem:[%s206 + $0xb2] sm:$0xff]
    %v249 = vld [vmem:[%s206 + $0xc2] sm:$0xff]
    %v250 = vld [vmem:[%s206 + $0xd2] sm:$0xff]
    %v251 = vld [vmem:[%s206 + $0xe2] sm:$0xff]
    %v252 = vld [vmem:[%s206 + $0xf2] sm:$0xff]
    %v253 = vld [vmem:[%s206 + $0x102] sm:$0xff]
    %v254 = vld [vmem:[%s206 + $0x112] sm:$0xff]
    %271 = vrot.lane.b32.xlu0 %v126, 16
    %v272 = vpop.permute.xlu0 %271
    %273 = vrot.lane.b32.xlu0 %v127, 16
    %v274 = vpop.permute.xlu0 %273
    %275 = vrot.lane.b32.xlu0 %v128, 16
    %v276 = vpop.permute.xlu0 %275
    %277 = vrot.lane.b32.xlu0 %v129, 16
    %v278 = vpop.permute.xlu0 %277
    %279 = vrot.lane.b32.xlu0 %v130, 16
    %v280 = vpop.permute.xlu0 %279
    %281 = vrot.lane.b32.xlu0 %v131, 16
    %v282 = vpop.permute.xlu0 %281
    %283 = vrot.lane.b32.xlu0 %v132, 16
    %v284 = vpop.permute.xlu0 %283
    %285 = vrot.lane.b32.xlu0 %v133, 16
    %v286 = vpop.permute.xlu0 %285
    %287 = vrot.lane.b32.xlu0 %v134, 16
    %v288 = vpop.permute.xlu0 %287
    %289 = vrot.lane.b32.xlu0 %v135, 16
    %v290 = vpop.permute.xlu0 %289
    %291 = vrot.lane.b32.xlu0 %v136, 16
    %v292 = vpop.permute.xlu0 %291
    %293 = vrot.lane.b32.xlu0 %v137, 16
    %v294 = vpop.permute.xlu0 %293
    %295 = vrot.lane.b32.xlu0 %v138, 16
    %v296 = vpop.permute.xlu0 %295
    %297 = vrot.lane.b32.xlu0 %v139, 16
    %v298 = vpop.permute.xlu0 %297
    %299 = vrot.lane.b32.xlu0 %v140, 16
    %v300 = vpop.permute.xlu0 %299
    %301 = vrot.lane.b32.xlu0 %v141, 16
    %v302 = vpop.permute.xlu0 %301
    %335 = vrot.lane.b32.xlu0 %v142, 32
    %v336 = vpop.permute.xlu0 %335
    %337 = vrot.lane.b32.xlu0 %v143, 32
    %v338 = vpop.permute.xlu0 %337
    %339 = vrot.lane.b32.xlu0 %v144, 32
    %v340 = vpop.permute.xlu0 %339
    %341 = vrot.lane.b32.xlu0 %v145, 32
    %v342 = vpop.permute.xlu0 %341
    %343 = vrot.lane.b32.xlu0 %v146, 32
    %v344 = vpop.permute.xlu0 %343
    %345 = vrot.lane.b32.xlu0 %v147, 32
    %v346 = vpop.permute.xlu0 %345
    %347 = vrot.lane.b32.xlu0 %v148, 32
    %v348 = vpop.permute.xlu0 %347
    %349 = vrot.lane.b32.xlu0 %v149, 32
    %v350 = vpop.permute.xlu0 %349
    %351 = vrot.lane.b32.xlu0 %v150, 32
    %v352 = vpop.permute.xlu0 %351
    %353 = vrot.lane.b32.xlu0 %v151, 32
    %v354 = vpop.permute.xlu0 %353
    %355 = vrot.lane.b32.xlu0 %v152, 32
    %v356 = vpop.permute.xlu0 %355
    %357 = vrot.lane.b32.xlu0 %v153, 32
    %v358 = vpop.permute.xlu0 %357
    %359 = vrot.lane.b32.xlu0 %v154, 32
    %v360 = vpop.permute.xlu0 %359
    %361 = vrot.lane.b32.xlu0 %v155, 32
    %v362 = vpop.permute.xlu0 %361
    %363 = vrot.lane.b32.xlu0 %v156, 32
    %v364 = vpop.permute.xlu0 %363
    %365 = vrot.lane.b32.xlu0 %v157, 32
    %v366 = vpop.permute.xlu0 %365
    %399 = vrot.lane.b32.xlu0 %v158, 48
    %v400 = vpop.permute.xlu0 %399
    %401 = vrot.lane.b32.xlu0 %v159, 48
    %v402 = vpop.permute.xlu0 %401
    %403 = vrot.lane.b32.xlu0 %v160, 48
    %v404 = vpop.permute.xlu0 %403
    %405 = vrot.lane.b32.xlu0 %v161, 48
    %v406 = vpop.permute.xlu0 %405
    %407 = vrot.lane.b32.xlu0 %v162, 48
    %v408 = vpop.permute.xlu0 %407
    %409 = vrot.lane.b32.xlu0 %v163, 48
    %v410 = vpop.permute.xlu0 %409
    %411 = vrot.lane.b32.xlu0 %v164, 48
    %v412 = vpop.permute.xlu0 %411
    %413 = vrot.lane.b32.xlu0 %v165, 48
    %v414 = vpop.permute.xlu0 %413
    %415 = vrot.lane.b32.xlu0 %v166, 48
    %v416 = vpop.permute.xlu0 %415
    %417 = vrot.lane.b32.xlu0 %v167, 48
    %v418 = vpop.permute.xlu0 %417
    %419 = vrot.lane.b32.xlu0 %v168, 48
    %v420 = vpop.permute.xlu0 %419
    %421 = vrot.lane.b32.xlu0 %v169, 48
    %v422 = vpop.permute.xlu0 %421
    %423 = vrot.lane.b32.xlu0 %v170, 48
    %v424 = vpop.permute.xlu0 %423
    %425 = vrot.lane.b32.xlu0 %v171, 48
    %v426 = vpop.permute.xlu0 %425
    %427 = vrot.lane.b32.xlu0 %v172, 48
    %v428 = vpop.permute.xlu0 %427
    %429 = vrot.lane.b32.xlu0 %v173, 48
    %v430 = vpop.permute.xlu0 %429
    %463 = vrot.lane.b32.xlu0 %v174, 64
    %v464 = vpop.permute.xlu0 %463
    %465 = vrot.lane.b32.xlu0 %v175, 64
    %v466 = vpop.permute.xlu0 %465
    %467 = vrot.lane.b32.xlu0 %v176, 64
    %v468 = vpop.permute.xlu0 %467
    %469 = vrot.lane.b32.xlu0 %v177, 64
    %v470 = vpop.permute.xlu0 %469
    %471 = vrot.lane.b32.xlu0 %v178, 64
    %v472 = vpop.permute.xlu0 %471
    %473 = vrot.lane.b32.xlu0 %v179, 64
    %v474 = vpop.permute.xlu0 %473
    %475 = vrot.lane.b32.xlu0 %v180, 64
    %v476 = vpop.permute.xlu0 %475
    %477 = vrot.lane.b32.xlu0 %v181, 64
    %v478 = vpop.permute.xlu0 %477
    %479 = vrot.lane.b32.xlu0 %v182, 64
    %v480 = vpop.permute.xlu0 %479
    %481 = vrot.lane.b32.xlu0 %v183, 64
    %v482 = vpop.permute.xlu0 %481
    %483 = vrot.lane.b32.xlu0 %v184, 64
    %v484 = vpop.permute.xlu0 %483
    %485 = vrot.lane.b32.xlu0 %v185, 64
    %v486 = vpop.permute.xlu0 %485
    %487 = vrot.lane.b32.xlu0 %v186, 64
    %v488 = vpop.permute.xlu0 %487
    %489 = vrot.lane.b32.xlu0 %v187, 64
    %v490 = vpop.permute.xlu0 %489
    %491 = vrot.lane.b32.xlu0 %v188, 64
    %v492 = vpop.permute.xlu0 %491
    %493 = vrot.lane.b32.xlu0 %v189, 64
    %v494 = vpop.permute.xlu0 %493
    %527 = vrot.lane.b32.xlu0 %v190, 80
    %v528 = vpop.permute.xlu0 %527
    %529 = vrot.lane.b32.xlu0 %v191, 80
    %v530 = vpop.permute.xlu0 %529
    %531 = vrot.lane.b32.xlu0 %v192, 80
    %v532 = vpop.permute.xlu0 %531
    %533 = vrot.lane.b32.xlu0 %v193, 80
    %v534 = vpop.permute.xlu0 %533
    %535 = vrot.lane.b32.xlu0 %v194, 80
    %v536 = vpop.permute.xlu0 %535
    %537 = vrot.lane.b32.xlu0 %v195, 80
    %v538 = vpop.permute.xlu0 %537
    %539 = vrot.lane.b32.xlu0 %v196, 80
    %v540 = vpop.permute.xlu0 %539
    %541 = vrot.lane.b32.xlu0 %v197, 80
    %v542 = vpop.permute.xlu0 %541
    %543 = vrot.lane.b32.xlu0 %v198, 80
    %v544 = vpop.permute.xlu0 %543
    %545 = vrot.lane.b32.xlu0 %v199, 80
    %v546 = vpop.permute.xlu0 %545
    %547 = vrot.lane.b32.xlu0 %v200, 80
    %v548 = vpop.permute.xlu0 %547
    %549 = vrot.lane.b32.xlu0 %v201, 80
    %v550 = vpop.permute.xlu0 %549
    %551 = vrot.lane.b32.xlu0 %v202, 80
    %v552 = vpop.permute.xlu0 %551
    %553 = vrot.lane.b32.xlu0 %v203, 80
    %v554 = vpop.permute.xlu0 %553
    %555 = vrot.lane.b32.xlu0 %v204, 80
    %v556 = vpop.permute.xlu0 %555
    %557 = vrot.lane.b32.xlu0 %v205, 80
    %v558 = vpop.permute.xlu0 %557
    %591 = vrot.lane.b32.xlu0 %v207, 96
    %v592 = vpop.permute.xlu0 %591
    %593 = vrot.lane.b32.xlu0 %v208, 96
    %v594 = vpop.permute.xlu0 %593
    %595 = vrot.lane.b32.xlu0 %v209, 96
    %v596 = vpop.permute.xlu0 %595
    %597 = vrot.lane.b32.xlu0 %v210, 96
    %v598 = vpop.permute.xlu0 %597
    %599 = vrot.lane.b32.xlu0 %v211, 96
    %v600 = vpop.permute.xlu0 %599
    %601 = vrot.lane.b32.xlu0 %v212, 96
    %v602 = vpop.permute.xlu0 %601
    %603 = vrot.lane.b32.xlu0 %v213, 96
    %v604 = vpop.permute.xlu0 %603
    %605 = vrot.lane.b32.xlu0 %v214, 96
    %v606 = vpop.permute.xlu0 %605
    %607 = vrot.lane.b32.xlu0 %v215, 96
    %v608 = vpop.permute.xlu0 %607
    %609 = vrot.lane.b32.xlu0 %v216, 96
    %v610 = vpop.permute.xlu0 %609
    %611 = vrot.lane.b32.xlu0 %v217, 96
    %v612 = vpop.permute.xlu0 %611
    %613 = vrot.lane.b32.xlu0 %v218, 96
    %v614 = vpop.permute.xlu0 %613
    %615 = vrot.lane.b32.xlu0 %v219, 96
    %v616 = vpop.permute.xlu0 %615
    %617 = vrot.lane.b32.xlu0 %v220, 96
    %v618 = vpop.permute.xlu0 %617
    %619 = vrot.lane.b32.xlu0 %v221, 96
    %v620 = vpop.permute.xlu0 %619
    %621 = vrot.lane.b32.xlu0 %v222, 96
    %v622 = vpop.permute.xlu0 %621
    %655 = vrot.lane.b32.xlu0 %v223, 112
    %v656 = vpop.permute.xlu0 %655
    %657 = vrot.lane.b32.xlu0 %v224, 112
    %v658 = vpop.permute.xlu0 %657
    %659 = vrot.lane.b32.xlu0 %v225, 112
    %v660 = vpop.permute.xlu0 %659
    %661 = vrot.lane.b32.xlu0 %v226, 112
    %v662 = vpop.permute.xlu0 %661
    %663 = vrot.lane.b32.xlu0 %v227, 112
    %v664 = vpop.permute.xlu0 %663
    %665 = vrot.lane.b32.xlu0 %v228, 112
    %v666 = vpop.permute.xlu0 %665
    %667 = vrot.lane.b32.xlu0 %v229, 112
    %v668 = vpop.permute.xlu0 %667
    %669 = vrot.lane.b32.xlu0 %v230, 112
    %v670 = vpop.permute.xlu0 %669
    %671 = vrot.lane.b32.xlu0 %v231, 112
    %v672 = vpop.permute.xlu0 %671
    %673 = vrot.lane.b32.xlu0 %v232, 112
    %v674 = vpop.permute.xlu0 %673
    %675 = vrot.lane.b32.xlu0 %v233, 112
    %v676 = vpop.permute.xlu0 %675
    %677 = vrot.lane.b32.xlu0 %v234, 112
    %v678 = vpop.permute.xlu0 %677
    %679 = vrot.lane.b32.xlu0 %v235, 112
    %v680 = vpop.permute.xlu0 %679
    %681 = vrot.lane.b32.xlu0 %v236, 112
    %v682 = vpop.permute.xlu0 %681
    %683 = vrot.lane.b32.xlu0 %v237, 112
    %v684 = vpop.permute.xlu0 %683
    %685 = vrot.lane.b32.xlu0 %v238, 112
    %v686 = vpop.permute.xlu0 %685
    %v703 = vsel %vm35, %v110, %v272
    %v704 = vsel %vm35, %v111, %v274
    %v705 = vsel %vm35, %v112, %v276
    %v706 = vsel %vm35, %v113, %v278
    %v707 = vsel %vm35, %v114, %v280
    %v708 = vsel %vm35, %v115, %v282
    %v709 = vsel %vm35, %v116, %v284
    %v710 = vsel %vm35, %v117, %v286
    %v711 = vsel %vm35, %v118, %v288
    %v712 = vsel %vm35, %v119, %v290
    %v713 = vsel %vm35, %v120, %v292
    %v714 = vsel %vm35, %v121, %v294
    %v715 = vsel %vm35, %v122, %v296
    %v716 = vsel %vm35, %v123, %v298
    %v717 = vsel %vm35, %v124, %v300
    %v718 = vsel %vm35, %v125, %v302
    %vm719 = vcmask 261120
    %v720 = vsel %vm719, %v703, %v336
    %v721 = vsel %vm719, %v704, %v338
    %v722 = vsel %vm719, %v705, %v340
    %v723 = vsel %vm719, %v706, %v342
    %v724 = vsel %vm719, %v707, %v344
    %v725 = vsel %vm719, %v708, %v346
    %v726 = vsel %vm719, %v709, %v348
    %v727 = vsel %vm719, %v710, %v350
    %v728 = vsel %vm719, %v711, %v352
    %v729 = vsel %vm719, %v712, %v354
    %v730 = vsel %vm719, %v713, %v356
    %v731 = vsel %vm719, %v714, %v358
    %v732 = vsel %vm719, %v715, %v360
    %v733 = vsel %vm719, %v716, %v362
    %v734 = vsel %vm719, %v717, %v364
    %v735 = vsel %vm719, %v718, %v366
    %vm736 = vcmask 392192
    %v737 = vsel %vm736, %v720, %v400
    %v738 = vsel %vm736, %v721, %v402
    %v739 = vsel %vm736, %v722, %v404
    %v740 = vsel %vm736, %v723, %v406
    %v741 = vsel %vm736, %v724, %v408
    %v742 = vsel %vm736, %v725, %v410
    %v743 = vsel %vm736, %v726, %v412
    %v744 = vsel %vm736, %v727, %v414
    %v745 = vsel %vm736, %v728, %v416
    %v746 = vsel %vm736, %v729, %v418
    %v747 = vsel %vm736, %v730, %v420
    %v748 = vsel %vm736, %v731, %v422
    %v749 = vsel %vm736, %v732, %v424
    %v750 = vsel %vm736, %v733, %v426
    %v751 = vsel %vm736, %v734, %v428
    %v752 = vsel %vm736, %v735, %v430
    %vm753 = vcmask 523264
    %v754 = vsel %vm753, %v737, %v464
    %v755 = vsel %vm753, %v738, %v466
    %v756 = vsel %vm753, %v739, %v468
    %v757 = vsel %vm753, %v740, %v470
    %v758 = vsel %vm753, %v741, %v472
    %v759 = vsel %vm753, %v742, %v474
    %v760 = vsel %vm753, %v743, %v476
    %v761 = vsel %vm753, %v744, %v478
    %v762 = vsel %vm753, %v745, %v480
    %v763 = vsel %vm753, %v746, %v482
    %v764 = vsel %vm753, %v747, %v484
    %v765 = vsel %vm753, %v748, %v486
    %v766 = vsel %vm753, %v749, %v488
    %v767 = vsel %vm753, %v750, %v490
    %v768 = vsel %vm753, %v751, %v492
    %v769 = vsel %vm753, %v752, %v494
    %vm770 = vcmask 654336
    %v771 = vsel %vm770, %v754, %v528
    %v772 = vsel %vm770, %v755, %v530
    %v773 = vsel %vm770, %v756, %v532
    %v774 = vsel %vm770, %v757, %v534
    %v775 = vsel %vm770, %v758, %v536
    %v776 = vsel %vm770, %v759, %v538
    %v777 = vsel %vm770, %v760, %v540
    %v778 = vsel %vm770, %v761, %v542
    %v779 = vsel %vm770, %v762, %v544
    %v780 = vsel %vm770, %v763, %v546
    %v781 = vsel %vm770, %v764, %v548
    %v782 = vsel %vm770, %v765, %v550
    %v783 = vsel %vm770, %v766, %v552
    %v784 = vsel %vm770, %v767, %v554
    %v785 = vsel %vm770, %v768, %v556
    %v786 = vsel %vm770, %v769, %v558
    %vm787 = vcmask 785408
    %v788 = vsel %vm787, %v771, %v592
    %v789 = vsel %vm787, %v772, %v594
    %v790 = vsel %vm787, %v773, %v596
    %v791 = vsel %vm787, %v774, %v598
    %v792 = vsel %vm787, %v775, %v600
    %v793 = vsel %vm787, %v776, %v602
    %v794 = vsel %vm787, %v777, %v604
    %v795 = vsel %vm787, %v778, %v606
    %v796 = vsel %vm787, %v779, %v608
    %v797 = vsel %vm787, %v780, %v610
    %v798 = vsel %vm787, %v781, %v612
    %v799 = vsel %vm787, %v782, %v614
    %v800 = vsel %vm787, %v783, %v616
    %v801 = vsel %vm787, %v784, %v618
    %v802 = vsel %vm787, %v785, %v620
    %v803 = vsel %vm787, %v786, %v622
    %vm804 = vcmask 916480
    %v805 = vsel %vm804, %v788, %v656
    %v806 = vsel %vm804, %v789, %v658
    %v807 = vsel %vm804, %v790, %v660
    %v808 = vsel %vm804, %v791, %v662
    %v809 = vsel %vm804, %v792, %v664
    %v810 = vsel %vm804, %v793, %v666
    %v811 = vsel %vm804, %v794, %v668
    %v812 = vsel %vm804, %v795, %v670
    %v813 = vsel %vm804, %v796, %v672
    %v814 = vsel %vm804, %v797, %v674
    %v815 = vsel %vm804, %v798, %v676
    %v816 = vsel %vm804, %v799, %v678
    %v817 = vsel %vm804, %v800, %v680
    %v818 = vsel %vm804, %v801, %v682
    %v819 = vsel %vm804, %v802, %v684
    %v820 = vsel %vm804, %v803, %v686
    %v821 = vld [vmem:[%s1] sm:$0xff]
    %v822 = vld [vmem:[%s1 + $0x8] sm:$0xff]
    %v823 = vld [vmem:[%s1 + $0x10] sm:$0xff]
    %v824 = vld [vmem:[%s1 + $0x18] sm:$0xff]
    %v825 = vld [vmem:[%s1 + $0x20] sm:$0xff]
    %v826 = vld [vmem:[%s1 + $0x28] sm:$0xff]
    %v827 = vld [vmem:[%s1 + $0x30] sm:$0xff]
    %v828 = vld [vmem:[%s1 + $0x38] sm:$0xff]
    %v829 = vld [vmem:[%s1 + $0x40] sm:$0xff]
    %v830 = vld [vmem:[%s1 + $0x48] sm:$0xff]
    %v831 = vld [vmem:[%s1 + $0x50] sm:$0xff]
    %v832 = vld [vmem:[%s1 + $0x58] sm:$0xff]
    %v833 = vld [vmem:[%s1 + $0x60] sm:$0xff]
    %v834 = vld [vmem:[%s1 + $0x68] sm:$0xff]
    %v835 = vld [vmem:[%s1 + $0x70] sm:$0xff]
    %v836 = vld [vmem:[%s1 + $0x78] sm:$0xff]
    %v837 = vld [vmem:[%s1 + $0x80] sm:$0xff]
    %v838 = vld [vmem:[%s1 + $0x88] sm:$0xff]
    %v839 = vld [vmem:[%s2] sm:$0x1]
    %v841 = vlaneseq
    %v842 = vshrl.u32 %v841, 7
    %v843 = vsub.s32 0, %v842
    %v844 = vrot.slane %v839, %v843
    %v847 = vsel %vm35, %v239, 0
    %v850 = vsel %vm35, %v240, 0
    %v853 = vsel %vm35, %v241, 0
    %v856 = vsel %vm35, %v242, 0
    %v859 = vsel %vm35, %v243, 0
    %v862 = vsel %vm35, %v244, 0
    %v865 = vsel %vm35, %v245, 0
    %v868 = vsel %vm35, %v246, 0
    %v871 = vsel %vm35, %v247, 0
    %v874 = vsel %vm35, %v248, 0
    %v877 = vsel %vm35, %v249, 0
    %v880 = vsel %vm35, %v250, 0
    %v883 = vsel %vm35, %v251, 0
    %v886 = vsel %vm35, %v252, 0
    %v889 = vsel %vm35, %v253, 0
    %v892 = vsel %vm35, %v254, 0
    %894 = vmatprep.subr.mxu0 0.0
    %895 = vmatpush1.msra.mxu0 %v821
    %896 = vmatprep.subr.mxu0 0.0
    %897 = vmatpush1.msra.mxu0 %v822
    %898 = vmatprep.subr.mxu0 0.0
    %899 = vmatpush1.msra.mxu0 %v823
    %900 = vmatprep.subr.mxu0 0.0
    %901 = vmatpush1.msra.mxu0 %v824
    %902 = vmatprep.subr.mxu0 0.0
    %903 = vmatpush1.msra.mxu0 %v825
    %904 = vmatprep.subr.mxu0 0.0
    %905 = vmatpush1.msra.mxu0 %v826
    %906 = vmatprep.subr.mxu0 0.0
    %907 = vmatpush1.msra.mxu0 %v827
    %908 = vmatprep.subr.mxu0 0.0
    %909 = vmatpush1.msra.mxu0 %v828
    %910 = vmatprep.subr.mxu0 0.0
    %911 = vmatpush1.msra.mxu0 %v829
    %912 = vmatprep.subr.mxu0 0.0
    %913 = vmatpush1.msra.mxu0 %v830
    %914 = vmatprep.subr.mxu0 0.0
    %915 = vmatpush1.msra.mxu0 %v831
    %916 = vmatprep.subr.mxu0 0.0
    %917 = vmatpush1.msra.mxu0 %v832
    %918 = vmatprep.subr.mxu0 0.0
    %919 = vmatpush1.msra.mxu0 %v833
    %920 = vmatprep.subr.mxu0 0.0
    %921 = vmatpush1.msra.mxu0 %v834
    %922 = vmatprep.subr.mxu0 0.0
    %923 = vmatpush1.msra.mxu0 %v835
    %924 = vmatprep.subr.mxu0 0.0
    %925 = vmatpush1.msra.mxu0 %v836
    %926 = vmatprep.subr.mxu0 0.0
    %927 = vmatpush1.msra.mxu0 %v837
    %928 = vmatprep.subr.mxu0 0.0
    %929 = vmatpush1.msra.mxu0 %v838
    %930 = vmatprep.subr.mxu0 0.0
    %931 = vmatpush1.msra.mxu0 0.0
    %932 = vmatprep.subr.mxu0 0.0
    %933 = vmatpush1.msra.mxu0 0.0
    %934 = vmatprep.subr.mxu0 0.0
    %935 = vmatpush1.msra.mxu0 0.0
    %936 = vmatprep.subr.mxu0 0.0
    %937 = vmatpush1.msra.mxu0 0.0
    %938 = vmatprep.subr.mxu0 0.0
    %939 = vmatpush1.msra.mxu0 0.0
    %940 = vmatprep.subr.mxu0 0.0
    %941 = vmatpush1.msra.mxu0 0.0
    %942 = vmatprep.subr.mxu0 0.0
    %943 = vmatpush1.msra.mxu0 0.0
    %944 = vmatprep.subr.mxu0 0.0
    %945 = vmatpush1.msra.mxu0 0.0
    %946 = vmatprep.subr.mxu0 0.0
    %947 = vmatpush1.msra.mxu0 0.0
    %948 = vmatprep.subr.mxu0 0.0
    %949 = vmatpush1.msra.mxu0 0.0
    %950 = vmatprep.subr.mxu0 0.0
    %951 = vmatpush1.msra.mxu0 0.0
    %952 = vmatprep.subr.mxu0 0.0
    %953 = vmatpush1.msra.mxu0 0.0
    %954 = vmatprep.subr.mxu0 0.0
    %955 = vmatpush1.msra.mxu0 0.0
    %956 = vmatprep.subr.mxu0 0.0
    %957 = vmatpush1.msra.mxu0 0.0
    %958 = vmatprep.mubr.f32.mxu0 %v847
    %959 = vmatmul.mubr.f32.gmra.mrb[0].mxu0 %v805
    %v960 = vpop.f32.mrb[0].mxu0
    %v961 = vadd.f32 %v844, %v960
    %v962 = vpop.f32.mrb[0].mxu0
    %963 = vmatprep.mubr.f32.mxu0 %v850
    %964 = vmatmul.mubr.f32.gmra.mrb[0].mxu0 %v806
    %v965 = vpop.f32.mrb[0].mxu0
    %v966 = vadd.f32 %v844, %v965
    %v967 = vpop.f32.mrb[0].mxu0
    %968 = vmatprep.mubr.f32.mxu0 %v853
    %969 = vmatmul.mubr.f32.gmra.mrb[0].mxu0 %v807
    %v970 = vpop.f32.mrb[0].mxu0
    %v971 = vadd.f32 %v844, %v970
    %v972 = vpop.f32.mrb[0].mxu0
    %973 = vmatprep.mubr.f32.mxu0 %v856
    %974 = vmatmul.mubr.f32.gmra.mrb[0].mxu0 %v808
    %v975 = vpop.f32.mrb[0].mxu0
    %v976 = vadd.f32 %v844, %v975
    %v977 = vpop.f32.mrb[0].mxu0
    %978 = vmatprep.mubr.f32.mxu0 %v859
    %979 = vmatmul.mubr.f32.gmra.mrb[0].mxu0 %v809
    %v980 = vpop.f32.mrb[0].mxu0
    %v981 = vadd.f32 %v844, %v980
    %v982 = vpop.f32.mrb[0].mxu0
    %983 = vmatprep.mubr.f32.mxu0 %v862
    %984 = vmatmul.mubr.f32.gmra.mrb[0].mxu0 %v810
    %v985 = vpop.f32.mrb[0].mxu0
    %v986 = vadd.f32 %v844, %v985
    %v987 = vpop.f32.mrb[0].mxu0
    %988 = vmatprep.mubr.f32.mxu0 %v865
    %989 = vmatmul.mubr.f32.gmra.mrb[0].mxu0 %v811
    %v990 = vpop.f32.mrb[0].mxu0
    %v991 = vadd.f32 %v844, %v990
    %v992 = vpop.f32.mrb[0].mxu0
    %993 = vmatprep.mubr.f32.mxu0 %v868
    %994 = vmatmul.mubr.f32.gmra.mrb[0].mxu0 %v812
    %v995 = vpop.f32.mrb[0].mxu0
    %v996 = vadd.f32 %v844, %v995
    %v997 = vpop.f32.mrb[0].mxu0
    %998 = vmatprep.mubr.f32.mxu0 %v871
    %999 = vmatmul.mubr.f32.gmra.mrb[0].mxu0 %v813
    %v1000 = vpop.f32.mrb[0].mxu0
    %v1001 = vadd.f32 %v844, %v1000
    %v1002 = vpop.f32.mrb[0].mxu0
    %1003 = vmatprep.mubr.f32.mxu0 %v874
    %1004 = vmatmul.mubr.f32.gmra.mrb[0].mxu0 %v814
    %v1005 = vpop.f32.mrb[0].mxu0
    %v1006 = vadd.f32 %v844, %v1005
    %v1007 = vpop.f32.mrb[0].mxu0
    %1008 = vmatprep.mubr.f32.mxu0 %v877
    %1009 = vmatmul.mubr.f32.gmra.mrb[0].mxu0 %v815
    %v1010 = vpop.f32.mrb[0].mxu0
    %v1011 = vadd.f32 %v844, %v1010
    %v1012 = vpop.f32.mrb[0].mxu0
    %1013 = vmatprep.mubr.f32.mxu0 %v880
    %1014 = vmatmul.mubr.f32.gmra.mrb[0].mxu0 %v816
    %v1015 = vpop.f32.mrb[0].mxu0
    %v1016 = vadd.f32 %v844, %v1015
    %v1017 = vpop.f32.mrb[0].mxu0
    %1018 = vmatprep.mubr.f32.mxu0 %v883
    %1019 = vmatmul.mubr.f32.gmra.mrb[0].mxu0 %v817
    %v1020 = vpop.f32.mrb[0].mxu0
    %v1021 = vadd.f32 %v844, %v1020
    %v1022 = vpop.f32.mrb[0].mxu0
    %1023 = vmatprep.mubr.f32.mxu0 %v886
    %1024 = vmatmul.mubr.f32.gmra.mrb[0].mxu0 %v818
    %v1025 = vpop.f32.mrb[0].mxu0
    %v1026 = vadd.f32 %v844, %v1025
    %v1027 = vpop.f32.mrb[0].mxu0
    %1028 = vmatprep.mubr.f32.mxu0 %v889
    %1029 = vmatmul.mubr.f32.gmra.mrb[0].mxu0 %v819
    %v1030 = vpop.f32.mrb[0].mxu0
    %v1031 = vadd.f32 %v844, %v1030
    %v1032 = vpop.f32.mrb[0].mxu0
    %1033 = vmatprep.mubr.f32.mxu0 %v892
    %1034 = vmatmul.mubr.f32.gmra.mrb[0].mxu0 %v820
    %v1035 = vpop.f32.mrb[0].mxu0
    %v1036 = vadd.f32 %v844, %v1035
    %v1037 = vpop.f32.mrb[0].mxu0
    %1038 = vdwg.mxu0
    %v1039 = vmax.f32 %v961, 0.0
    %v1040 = vmax.f32 %v966, 0.0
    %v1041 = vmax.f32 %v971, 0.0
    %v1042 = vmax.f32 %v976, 0.0
    %v1043 = vmax.f32 %v981, 0.0
    %v1044 = vmax.f32 %v986, 0.0
    %v1045 = vmax.f32 %v991, 0.0
    %v1046 = vmax.f32 %v996, 0.0
    %v1047 = vmax.f32 %v1001, 0.0
    %v1048 = vmax.f32 %v1006, 0.0
    %v1049 = vmax.f32 %v1011, 0.0
    %v1050 = vmax.f32 %v1016, 0.0
    %v1051 = vmax.f32 %v1021, 0.0
    %v1052 = vmax.f32 %v1026, 0.0
    %v1053 = vmax.f32 %v1031, 0.0
    %v1054 = vmax.f32 %v1036, 0.0
    %1055 = vst.msk [vmem:[#allocation3] sm:$0xff] %vm719, 0.0
    %vm1056 = vcmask 254976
    %1057 = vst.msk [vmem:[#allocation3 + $0x8] sm:$0x3] %vm1056, 0.0
    %1058 = vst.msk [vmem:[#allocation3 + $0x10] sm:$0xff] %vm719, 0.0
    %1059 = vst.msk [vmem:[#allocation3 + $0x18] sm:$0x3] %vm1056, 0.0
    %1060 = vst.msk [vmem:[#allocation3 + $0x20] sm:$0xff] %vm719, 0.0
    %1061 = vst.msk [vmem:[#allocation3 + $0x28] sm:$0x3] %vm1056, 0.0
    %1062 = vst.msk [vmem:[#allocation3 + $0x30] sm:$0xff] %vm719, 0.0
    %1063 = vst.msk [vmem:[#allocation3 + $0x38] sm:$0x3] %vm1056, 0.0
    %1064 = vst.msk [vmem:[#allocation3 + $0x40] sm:$0xff] %vm719, 0.0
    %1065 = vst.msk [vmem:[#allocation3 + $0x48] sm:$0x3] %vm1056, 0.0
    %1066 = vst.msk [vmem:[#allocation3 + $0x50] sm:$0xff] %vm719, 0.0
    %1067 = vst.msk [vmem:[#allocation3 + $0x58] sm:$0x3] %vm1056, 0.0
    %1068 = vst.msk [vmem:[#allocation3 + $0x60] sm:$0xff] %vm719, 0.0
    %1069 = vst.msk [vmem:[#allocation3 + $0x68] sm:$0x3] %vm1056, 0.0
    %1070 = vst.msk [vmem:[#allocation3 + $0x70] sm:$0xff] %vm719, 0.0
    %1071 = vst.msk [vmem:[#allocation3 + $0x78] sm:$0x3] %vm1056, 0.0
    %1072 = vst.msk [vmem:[#allocation3 + $0x80] sm:$0xff] %vm719, 0.0
    %1073 = vst.msk [vmem:[#allocation3 + $0x88] sm:$0x3] %vm1056, 0.0
    %1074 = vst.msk [vmem:[#allocation3 + $0x90] sm:$0xff] %vm719, 0.0
    %1075 = vst.msk [vmem:[#allocation3 + $0x98] sm:$0x3] %vm1056, 0.0
    %1076 = vst.msk [vmem:[#allocation3 + $0xa0] sm:$0xff] %vm719, 0.0
    %1077 = vst.msk [vmem:[#allocation3 + $0xa8] sm:$0x3] %vm1056, 0.0
    %1078 = vst.msk [vmem:[#allocation3 + $0xb0] sm:$0xff] %vm719, 0.0
    %1079 = vst.msk [vmem:[#allocation3 + $0xb8] sm:$0x3] %vm1056, 0.0
    %1080 = vst.msk [vmem:[#allocation3 + $0xc0] sm:$0xff] %vm719, 0.0
    %1081 = vst.msk [vmem:[#allocation3 + $0xc8] sm:$0x3] %vm1056, 0.0
    %1082 = vst.msk [vmem:[#allocation3 + $0xd0] sm:$0xff] %vm719, 0.0
    %1083 = vst.msk [vmem:[#allocation3 + $0xd8] sm:$0x3] %vm1056, 0.0
    %1084 = vst.msk [vmem:[#allocation3 + $0xe0] sm:$0xff] %vm719, 0.0
    %1085 = vst.msk [vmem:[#allocation3 + $0xe8] sm:$0x3] %vm1056, 0.0
    %1086 = vst.msk [vmem:[#allocation3 + $0xf0] sm:$0xff] %vm719, 0.0
    %1087 = vst.msk [vmem:[#allocation3 + $0xf8] sm:$0x3] %vm1056, 0.0
    %1088 = vst.msk [vmem:[#allocation3 + $0x100] sm:$0xff] %vm719, 0.0
    %1089 = vst.msk [vmem:[#allocation3 + $0x108] sm:$0x3] %vm1056, 0.0
    %1090 = vst.msk [vmem:[#allocation3 + $0x110] sm:$0xff] %vm719, 0.0
    %1091 = vst.msk [vmem:[#allocation3 + $0x118] sm:$0x3] %vm1056, 0.0
    %1092 = vst.msk [vmem:[#allocation3 + $0x120] sm:$0xff] %vm719, 0.0
    %1093 = vst.msk [vmem:[#allocation3 + $0x128] sm:$0x3] %vm1056, 0.0
    %1094 = vst.msk [vmem:[#allocation3 + $0x130] sm:$0xff] %vm719, 0.0
    %1095 = vst.msk [vmem:[#allocation3 + $0x138] sm:$0x3] %vm1056, 0.0
    %s1096 = scalar_lea.vmem [#allocation3], 16
    %1097 = vst.msk [vmem:[%s1096 + $0x1] sm:$0xff] %vm719, %v1039
    %1098 = vst.msk [vmem:[%s1096 + $0x11] sm:$0xff] %vm719, %v1040
    %1099 = vst.msk [vmem:[%s1096 + $0x21] sm:$0xff] %vm719, %v1041
    %1100 = vst.msk [vmem:[%s1096 + $0x31] sm:$0xff] %vm719, %v1042
    %1101 = vst.msk [vmem:[%s1096 + $0x41] sm:$0xff] %vm719, %v1043
    %1102 = vst.msk [vmem:[%s1096 + $0x51] sm:$0xff] %vm719, %v1044
    %1103 = vst.msk [vmem:[%s1096 + $0x61] sm:$0xff] %vm719, %v1045
    %1104 = vst.msk [vmem:[%s1096 + $0x71] sm:$0xff] %vm719, %v1046
    %1105 = vst.msk [vmem:[%s1096 + $0xa1] sm:$0xff] %vm719, %v1047
    %1106 = vst.msk [vmem:[%s1096 + $0xb1] sm:$0xff] %vm719, %v1048
    %1107 = vst.msk [vmem:[%s1096 + $0xc1] sm:$0xff] %vm719, %v1049
    %1108 = vst.msk [vmem:[%s1096 + $0xd1] sm:$0xff] %vm719, %v1050
    %1109 = vst.msk [vmem:[%s1096 + $0xe1] sm:$0xff] %vm719, %v1051
    %1110 = vst.msk [vmem:[%s1096 + $0xf1] sm:$0xff] %vm719, %v1052
    %1111 = vst.msk [vmem:[%s1096 + $0x101] sm:$0xff] %vm719, %v1053
    %1112 = vst.msk [vmem:[%s1096 + $0x111] sm:$0xff] %vm719, %v1054
    %v1113 = vld [vmem:[#allocation3] sm:$0xff]
    %v1114 = vld [vmem:[#allocation3 + $0x10] sm:$0xff]
    %v1115 = vld [vmem:[#allocation3 + $0x20] sm:$0xff]
    %v1116 = vld [vmem:[#allocation3 + $0x30] sm:$0xff]
    %v1117 = vld [vmem:[#allocation3 + $0x40] sm:$0xff]
    %v1118 = vld [vmem:[#allocation3 + $0x50] sm:$0xff]
    %v1119 = vld [vmem:[#allocation3 + $0x60] sm:$0xff]
    %v1120 = vld [vmem:[#allocation3 + $0x70] sm:$0xff]
    %v1121 = vld [vmem:[#allocation3 + $0xa0] sm:$0xff]
    %v1122 = vld [vmem:[#allocation3 + $0xb0] sm:$0xff]
    %v1123 = vld [vmem:[#allocation3 + $0xc0] sm:$0xff]
    %v1124 = vld [vmem:[#allocation3 + $0xd0] sm:$0xff]
    %v1125 = vld [vmem:[#allocation3 + $0xe0] sm:$0xff]
    %v1126 = vld [vmem:[#allocation3 + $0xf0] sm:$0xff]
    %v1127 = vld [vmem:[#allocation3 + $0x100] sm:$0xff]
    %v1128 = vld [vmem:[#allocation3 + $0x110] sm:$0xff]
    %v1129 = vld [vmem:[#allocation3 + $0x1] sm:$0xff]
    %v1130 = vld [vmem:[#allocation3 + $0x11] sm:$0xff]
    %v1131 = vld [vmem:[#allocation3 + $0x21] sm:$0xff]
    %v1132 = vld [vmem:[#allocation3 + $0x31] sm:$0xff]
    %v1133 = vld [vmem:[#allocation3 + $0x41] sm:$0xff]
    %v1134 = vld [vmem:[#allocation3 + $0x51] sm:$0xff]
    %v1135 = vld [vmem:[#allocation3 + $0x61] sm:$0xff]
    %v1136 = vld [vmem:[#allocation3 + $0x71] sm:$0xff]
    %v1137 = vld [vmem:[#allocation3 + $0xa1] sm:$0xff]
    %v1138 = vld [vmem:[#allocation3 + $0xb1] sm:$0xff]
    %v1139 = vld [vmem:[#allocation3 + $0xc1] sm:$0xff]
    %v1140 = vld [vmem:[#allocation3 + $0xd1] sm:$0xff]
    %v1141 = vld [vmem:[#allocation3 + $0xe1] sm:$0xff]
    %v1142 = vld [vmem:[#allocation3 + $0xf1] sm:$0xff]
    %v1143 = vld [vmem:[#allocation3 + $0x101] sm:$0xff]
    %v1144 = vld [vmem:[#allocation3 + $0x111] sm:$0xff]
    %v1145 = vld [vmem:[#allocation3 + $0x2] sm:$0xff]
    %v1146 = vld [vmem:[#allocation3 + $0x12] sm:$0xff]
    %v1147 = vld [vmem:[#allocation3 + $0x22] sm:$0xff]
    %v1148 = vld [vmem:[#allocation3 + $0x32] sm:$0xff]
    %v1149 = vld [vmem:[#allocation3 + $0x42] sm:$0xff]
    %v1150 = vld [vmem:[#allocation3 + $0x52] sm:$0xff]
    %v1151 = vld [vmem:[#allocation3 + $0x62] sm:$0xff]
    %v1152 = vld [vmem:[#allocation3 + $0x72] sm:$0xff]
    %v1153 = vld [vmem:[#allocation3 + $0xa2] sm:$0xff]
    %v1154 = vld [vmem:[#allocation3 + $0xb2] sm:$0xff]
    %v1155 = vld [vmem:[#allocation3 + $0xc2] sm:$0xff]
    %v1156 = vld [vmem:[#allocation3 + $0xd2] sm:$0xff]
    %v1157 = vld [vmem:[#allocation3 + $0xe2] sm:$0xff]
    %v1158 = vld [vmem:[#allocation3 + $0xf2] sm:$0xff]
    %v1159 = vld [vmem:[#allocation3 + $0x102] sm:$0xff]
    %v1160 = vld [vmem:[#allocation3 + $0x112] sm:$0xff]
    %v1161 = vld [vmem:[%s1096] sm:$0xff]
    %v1162 = vld [vmem:[%s1096 + $0x10] sm:$0xff]
    %v1163 = vld [vmem:[%s1096 + $0x20] sm:$0xff]
    %v1164 = vld [vmem:[%s1096 + $0x30] sm:$0xff]
    %v1165 = vld [vmem:[%s1096 + $0x40] sm:$0xff]
    %v1166 = vld [vmem:[%s1096 + $0x50] sm:$0xff]
    %v1167 = vld [vmem:[%s1096 + $0x60] sm:$0xff]
    %v1168 = vld [vmem:[%s1096 + $0x70] sm:$0xff]
    %v1169 = vld [vmem:[%s1096 + $0xa0] sm:$0xff]
    %v1170 = vld [vmem:[%s1096 + $0xb0] sm:$0xff]
    %v1171 = vld [vmem:[%s1096 + $0xc0] sm:$0xff]
    %v1172 = vld [vmem:[%s1096 + $0xd0] sm:$0xff]
    %v1173 = vld [vmem:[%s1096 + $0xe0] sm:$0xff]
    %v1174 = vld [vmem:[%s1096 + $0xf0] sm:$0xff]
    %v1175 = vld [vmem:[%s1096 + $0x100] sm:$0xff]
    %v1176 = vld [vmem:[%s1096 + $0x110] sm:$0xff]
    %v1177 = vld [vmem:[%s1096 + $0x1] sm:$0xff]
    %v1178 = vld [vmem:[%s1096 + $0x11] sm:$0xff]
    %v1179 = vld [vmem:[%s1096 + $0x21] sm:$0xff]
    %v1180 = vld [vmem:[%s1096 + $0x31] sm:$0xff]
    %v1181 = vld [vmem:[%s1096 + $0x41] sm:$0xff]
    %v1182 = vld [vmem:[%s1096 + $0x51] sm:$0xff]
    %v1183 = vld [vmem:[%s1096 + $0x61] sm:$0xff]
    %v1184 = vld [vmem:[%s1096 + $0x71] sm:$0xff]
    %v1185 = vld [vmem:[%s1096 + $0xa1] sm:$0xff]
    %v1186 = vld [vmem:[%s1096 + $0xb1] sm:$0xff]
    %v1187 = vld [vmem:[%s1096 + $0xc1] sm:$0xff]
    %v1188 = vld [vmem:[%s1096 + $0xd1] sm:$0xff]
    %v1189 = vld [vmem:[%s1096 + $0xe1] sm:$0xff]
    %v1190 = vld [vmem:[%s1096 + $0xf1] sm:$0xff]
    %v1191 = vld [vmem:[%s1096 + $0x101] sm:$0xff]
    %v1192 = vld [vmem:[%s1096 + $0x111] sm:$0xff]
    %v1193 = vld [vmem:[%s1096 + $0x2] sm:$0xff]
    %v1194 = vld [vmem:[%s1096 + $0x12] sm:$0xff]
    %v1195 = vld [vmem:[%s1096 + $0x22] sm:$0xff]
    %v1196 = vld [vmem:[%s1096 + $0x32] sm:$0xff]
    %v1197 = vld [vmem:[%s1096 + $0x42] sm:$0xff]
    %v1198 = vld [vmem:[%s1096 + $0x52] sm:$0xff]
    %v1199 = vld [vmem:[%s1096 + $0x62] sm:$0xff]
    %v1200 = vld [vmem:[%s1096 + $0x72] sm:$0xff]
    %v1201 = vld [vmem:[%s1096 + $0xa2] sm:$0xff]
    %v1202 = vld [vmem:[%s1096 + $0xb2] sm:$0xff]
    %v1203 = vld [vmem:[%s1096 + $0xc2] sm:$0xff]
    %v1204 = vld [vmem:[%s1096 + $0xd2] sm:$0xff]
    %v1205 = vld [vmem:[%s1096 + $0xe2] sm:$0xff]
    %v1206 = vld [vmem:[%s1096 + $0xf2] sm:$0xff]
    %v1207 = vld [vmem:[%s1096 + $0x102] sm:$0xff]
    %v1208 = vld [vmem:[%s1096 + $0x112] sm:$0xff]
    %s1209 = scalar_lea.vmem [#allocation3], 32
    %v1210 = vld [vmem:[%s1209] sm:$0xff]
    %v1211 = vld [vmem:[%s1209 + $0x10] sm:$0xff]
    %v1212 = vld [vmem:[%s1209 + $0x20] sm:$0xff]
    %v1213 = vld [vmem:[%s1209 + $0x30] sm:$0xff]
    %v1214 = vld [vmem:[%s1209 + $0x40] sm:$0xff]
    %v1215 = vld [vmem:[%s1209 + $0x50] sm:$0xff]
    %v1216 = vld [vmem:[%s1209 + $0x60] sm:$0xff]
    %v1217 = vld [vmem:[%s1209 + $0x70] sm:$0xff]
    %v1218 = vld [vmem:[%s1209 + $0xa0] sm:$0xff]
    %v1219 = vld [vmem:[%s1209 + $0xb0] sm:$0xff]
    %v1220 = vld [vmem:[%s1209 + $0xc0] sm:$0xff]
    %v1221 = vld [vmem:[%s1209 + $0xd0] sm:$0xff]
    %v1222 = vld [vmem:[%s1209 + $0xe0] sm:$0xff]
    %v1223 = vld [vmem:[%s1209 + $0xf0] sm:$0xff]
    %v1224 = vld [vmem:[%s1209 + $0x100] sm:$0xff]
    %v1225 = vld [vmem:[%s1209 + $0x110] sm:$0xff]
    %v1226 = vld [vmem:[%s1209 + $0x1] sm:$0xff]
    %v1227 = vld [vmem:[%s1209 + $0x11] sm:$0xff]
    %v1228 = vld [vmem:[%s1209 + $0x21] sm:$0xff]
    %v1229 = vld [vmem:[%s1209 + $0x31] sm:$0xff]
    %v1230 = vld [vmem:[%s1209 + $0x41] sm:$0xff]
    %v1231 = vld [vmem:[%s1209 + $0x51] sm:$0xff]
    %v1232 = vld [vmem:[%s1209 + $0x61] sm:$0xff]
    %v1233 = vld [vmem:[%s1209 + $0x71] sm:$0xff]
    %v1234 = vld [vmem:[%s1209 + $0xa1] sm:$0xff]
    %v1235 = vld [vmem:[%s1209 + $0xb1] sm:$0xff]
    %v1236 = vld [vmem:[%s1209 + $0xc1] sm:$0xff]
    %v1237 = vld [vmem:[%s1209 + $0xd1] sm:$0xff]
    %v1238 = vld [vmem:[%s1209 + $0xe1] sm:$0xff]
    %v1239 = vld [vmem:[%s1209 + $0xf1] sm:$0xff]
    %v1240 = vld [vmem:[%s1209 + $0x101] sm:$0xff]
    %v1241 = vld [vmem:[%s1209 + $0x111] sm:$0xff]
    %v1242 = vld [vmem:[%s1209 + $0x2] sm:$0xff]
    %v1243 = vld [vmem:[%s1209 + $0x12] sm:$0xff]
    %v1244 = vld [vmem:[%s1209 + $0x22] sm:$0xff]
    %v1245 = vld [vmem:[%s1209 + $0x32] sm:$0xff]
    %v1246 = vld [vmem:[%s1209 + $0x42] sm:$0xff]
    %v1247 = vld [vmem:[%s1209 + $0x52] sm:$0xff]
    %v1248 = vld [vmem:[%s1209 + $0x62] sm:$0xff]
    %v1249 = vld [vmem:[%s1209 + $0x72] sm:$0xff]
    %v1250 = vld [vmem:[%s1209 + $0xa2] sm:$0xff]
    %v1251 = vld [vmem:[%s1209 + $0xb2] sm:$0xff]
    %v1252 = vld [vmem:[%s1209 + $0xc2] sm:$0xff]
    %v1253 = vld [vmem:[%s1209 + $0xd2] sm:$0xff]
    %v1254 = vld [vmem:[%s1209 + $0xe2] sm:$0xff]
    %v1255 = vld [vmem:[%s1209 + $0xf2] sm:$0xff]
    %v1256 = vld [vmem:[%s1209 + $0x102] sm:$0xff]
    %v1257 = vld [vmem:[%s1209 + $0x112] sm:$0xff]
    %1274 = vrot.lane.b32.xlu0 %v1129, 32
    %v1275 = vpop.permute.xlu0 %1274
    %1276 = vrot.lane.b32.xlu0 %v1130, 32
    %v1277 = vpop.permute.xlu0 %1276
    %1278 = vrot.lane.b32.xlu0 %v1131, 32
    %v1279 = vpop.permute.xlu0 %1278
    %1280 = vrot.lane.b32.xlu0 %v1132, 32
    %v1281 = vpop.permute.xlu0 %1280
    %1282 = vrot.lane.b32.xlu0 %v1133, 32
    %v1283 = vpop.permute.xlu0 %1282
    %1284 = vrot.lane.b32.xlu0 %v1134, 32
    %v1285 = vpop.permute.xlu0 %1284
    %1286 = vrot.lane.b32.xlu0 %v1135, 32
    %v1287 = vpop.permute.xlu0 %1286
    %1288 = vrot.lane.b32.xlu0 %v1136, 32
    %v1289 = vpop.permute.xlu0 %1288
    %1290 = vrot.lane.b32.xlu0 %v1137, 32
    %v1291 = vpop.permute.xlu0 %1290
    %1292 = vrot.lane.b32.xlu0 %v1138, 32
    %v1293 = vpop.permute.xlu0 %1292
    %1294 = vrot.lane.b32.xlu0 %v1139, 32
    %v1295 = vpop.permute.xlu0 %1294
    %1296 = vrot.lane.b32.xlu0 %v1140, 32
    %v1297 = vpop.permute.xlu0 %1296
    %1298 = vrot.lane.b32.xlu0 %v1141, 32
    %v1299 = vpop.permute.xlu0 %1298
    %1300 = vrot.lane.b32.xlu0 %v1142, 32
    %v1301 = vpop.permute.xlu0 %1300
    %1302 = vrot.lane.b32.xlu0 %v1143, 32
    %v1303 = vpop.permute.xlu0 %1302
    %1304 = vrot.lane.b32.xlu0 %v1144, 32
    %v1305 = vpop.permute.xlu0 %1304
    %1338 = vrot.lane.b32.xlu0 %v1145, 64
    %v1339 = vpop.permute.xlu0 %1338
    %1340 = vrot.lane.b32.xlu0 %v1146, 64
    %v1341 = vpop.permute.xlu0 %1340
    %1342 = vrot.lane.b32.xlu0 %v1147, 64
    %v1343 = vpop.permute.xlu0 %1342
    %1344 = vrot.lane.b32.xlu0 %v1148, 64
    %v1345 = vpop.permute.xlu0 %1344
    %1346 = vrot.lane.b32.xlu0 %v1149, 64
    %v1347 = vpop.permute.xlu0 %1346
    %1348 = vrot.lane.b32.xlu0 %v1150, 64
    %v1349 = vpop.permute.xlu0 %1348
    %1350 = vrot.lane.b32.xlu0 %v1151, 64
    %v1351 = vpop.permute.xlu0 %1350
    %1352 = vrot.lane.b32.xlu0 %v1152, 64
    %v1353 = vpop.permute.xlu0 %1352
    %1354 = vrot.lane.b32.xlu0 %v1153, 64
    %v1355 = vpop.permute.xlu0 %1354
    %1356 = vrot.lane.b32.xlu0 %v1154, 64
    %v1357 = vpop.permute.xlu0 %1356
    %1358 = vrot.lane.b32.xlu0 %v1155, 64
    %v1359 = vpop.permute.xlu0 %1358
    %1360 = vrot.lane.b32.xlu0 %v1156, 64
    %v1361 = vpop.permute.xlu0 %1360
    %1362 = vrot.lane.b32.xlu0 %v1157, 64
    %v1363 = vpop.permute.xlu0 %1362
    %1364 = vrot.lane.b32.xlu0 %v1158, 64
    %v1365 = vpop.permute.xlu0 %1364
    %1366 = vrot.lane.b32.xlu0 %v1159, 64
    %v1367 = vpop.permute.xlu0 %1366
    %1368 = vrot.lane.b32.xlu0 %v1160, 64
    %v1369 = vpop.permute.xlu0 %1368
    %1402 = vrot.lane.b32.xlu0 %v1161, 96
    %v1403 = vpop.permute.xlu0 %1402
    %1404 = vrot.lane.b32.xlu0 %v1162, 96
    %v1405 = vpop.permute.xlu0 %1404
    %1406 = vrot.lane.b32.xlu0 %v1163, 96
    %v1407 = vpop.permute.xlu0 %1406
    %1408 = vrot.lane.b32.xlu0 %v1164, 96
    %v1409 = vpop.permute.xlu0 %1408
    %1410 = vrot.lane.b32.xlu0 %v1165, 96
    %v1411 = vpop.permute.xlu0 %1410
    %1412 = vrot.lane.b32.xlu0 %v1166, 96
    %v1413 = vpop.permute.xlu0 %1412
    %1414 = vrot.lane.b32.xlu0 %v1167, 96
    %v1415 = vpop.permute.xlu0 %1414
    %1416 = vrot.lane.b32.xlu0 %v1168, 96
    %v1417 = vpop.permute.xlu0 %1416
    %1418 = vrot.lane.b32.xlu0 %v1169, 96
    %v1419 = vpop.permute.xlu0 %1418
    %1420 = vrot.lane.b32.xlu0 %v1170, 96
    %v1421 = vpop.permute.xlu0 %1420
    %1422 = vrot.lane.b32.xlu0 %v1171, 96
    %v1423 = vpop.permute.xlu0 %1422
    %1424 = vrot.lane.b32.xlu0 %v1172, 96
    %v1425 = vpop.permute.xlu0 %1424
    %1426 = vrot.lane.b32.xlu0 %v1173, 96
    %v1427 = vpop.permute.xlu0 %1426
    %1428 = vrot.lane.b32.xlu0 %v1174, 96
    %v1429 = vpop.permute.xlu0 %1428
    %1430 = vrot.lane.b32.xlu0 %v1175, 96
    %v1431 = vpop.permute.xlu0 %1430
    %1432 = vrot.lane.b32.xlu0 %v1176, 96
    %v1433 = vpop.permute.xlu0 %1432
    %1466 = vrot.lane.b32.xlu0 %v1193, 32
    %v1467 = vpop.permute.xlu0 %1466
    %1468 = vrot.lane.b32.xlu0 %v1194, 32
    %v1469 = vpop.permute.xlu0 %1468
    %1470 = vrot.lane.b32.xlu0 %v1195, 32
    %v1471 = vpop.permute.xlu0 %1470
    %1472 = vrot.lane.b32.xlu0 %v1196, 32
    %v1473 = vpop.permute.xlu0 %1472
    %1474 = vrot.lane.b32.xlu0 %v1197, 32
    %v1475 = vpop.permute.xlu0 %1474
    %1476 = vrot.lane.b32.xlu0 %v1198, 32
    %v1477 = vpop.permute.xlu0 %1476
    %1478 = vrot.lane.b32.xlu0 %v1199, 32
    %v1479 = vpop.permute.xlu0 %1478
    %1480 = vrot.lane.b32.xlu0 %v1200, 32
    %v1481 = vpop.permute.xlu0 %1480
    %1482 = vrot.lane.b32.xlu0 %v1201, 32
    %v1483 = vpop.permute.xlu0 %1482
    %1484 = vrot.lane.b32.xlu0 %v1202, 32
    %v1485 = vpop.permute.xlu0 %1484
    %1486 = vrot.lane.b32.xlu0 %v1203, 32
    %v1487 = vpop.permute.xlu0 %1486
    %1488 = vrot.lane.b32.xlu0 %v1204, 32
    %v1489 = vpop.permute.xlu0 %1488
    %1490 = vrot.lane.b32.xlu0 %v1205, 32
    %v1491 = vpop.permute.xlu0 %1490
    %1492 = vrot.lane.b32.xlu0 %v1206, 32
    %v1493 = vpop.permute.xlu0 %1492
    %1494 = vrot.lane.b32.xlu0 %v1207, 32
    %v1495 = vpop.permute.xlu0 %1494
    %1496 = vrot.lane.b32.xlu0 %v1208, 32
    %v1497 = vpop.permute.xlu0 %1496
    %1530 = vrot.lane.b32.xlu0 %v1210, 64
    %v1531 = vpop.permute.xlu0 %1530
    %1532 = vrot.lane.b32.xlu0 %v1211, 64
    %v1533 = vpop.permute.xlu0 %1532
    %1534 = vrot.lane.b32.xlu0 %v1212, 64
    %v1535 = vpop.permute.xlu0 %1534
    %1536 = vrot.lane.b32.xlu0 %v1213, 64
    %v1537 = vpop.permute.xlu0 %1536
    %1538 = vrot.lane.b32.xlu0 %v1214, 64
    %v1539 = vpop.permute.xlu0 %1538
    %1540 = vrot.lane.b32.xlu0 %v1215, 64
    %v1541 = vpop.permute.xlu0 %1540
    %1542 = vrot.lane.b32.xlu0 %v1216, 64
    %v1543 = vpop.permute.xlu0 %1542
    %1544 = vrot.lane.b32.xlu0 %v1217, 64
    %v1545 = vpop.permute.xlu0 %1544
    %1546 = vrot.lane.b32.xlu0 %v1218, 64
    %v1547 = vpop.permute.xlu0 %1546
    %1548 = vrot.lane.b32.xlu0 %v1219, 64
    %v1549 = vpop.permute.xlu0 %1548
    %1550 = vrot.lane.b32.xlu0 %v1220, 64
    %v1551 = vpop.permute.xlu0 %1550
    %1552 = vrot.lane.b32.xlu0 %v1221, 64
    %v1553 = vpop.permute.xlu0 %1552
    %1554 = vrot.lane.b32.xlu0 %v1222, 64
    %v1555 = vpop.permute.xlu0 %1554
    %1556 = vrot.lane.b32.xlu0 %v1223, 64
    %v1557 = vpop.permute.xlu0 %1556
    %1558 = vrot.lane.b32.xlu0 %v1224, 64
    %v1559 = vpop.permute.xlu0 %1558
    %1560 = vrot.lane.b32.xlu0 %v1225, 64
    %v1561 = vpop.permute.xlu0 %1560
    %1594 = vrot.lane.b32.xlu0 %v1226, 96
    %v1595 = vpop.permute.xlu0 %1594
    %1596 = vrot.lane.b32.xlu0 %v1227, 96
    %v1597 = vpop.permute.xlu0 %1596
    %1598 = vrot.lane.b32.xlu0 %v1228, 96
    %v1599 = vpop.permute.xlu0 %1598
    %1600 = vrot.lane.b32.xlu0 %v1229, 96
    %v1601 = vpop.permute.xlu0 %1600
    %1602 = vrot.lane.b32.xlu0 %v1230, 96
    %v1603 = vpop.permute.xlu0 %1602
    %1604 = vrot.lane.b32.xlu0 %v1231, 96
    %v1605 = vpop.permute.xlu0 %1604
    %1606 = vrot.lane.b32.xlu0 %v1232, 96
    %v1607 = vpop.permute.xlu0 %1606
    %1608 = vrot.lane.b32.xlu0 %v1233, 96
    %v1609 = vpop.permute.xlu0 %1608
    %1610 = vrot.lane.b32.xlu0 %v1234, 96
    %v1611 = vpop.permute.xlu0 %1610
    %1612 = vrot.lane.b32.xlu0 %v1235, 96
    %v1613 = vpop.permute.xlu0 %1612
    %1614 = vrot.lane.b32.xlu0 %v1236, 96
    %v1615 = vpop.permute.xlu0 %1614
    %1616 = vrot.lane.b32.xlu0 %v1237, 96
    %v1617 = vpop.permute.xlu0 %1616
    %1618 = vrot.lane.b32.xlu0 %v1238, 96
    %v1619 = vpop.permute.xlu0 %1618
    %1620 = vrot.lane.b32.xlu0 %v1239, 96
    %v1621 = vpop.permute.xlu0 %1620
    %1622 = vrot.lane.b32.xlu0 %v1240, 96
    %v1623 = vpop.permute.xlu0 %1622
    %1624 = vrot.lane.b32.xlu0 %v1241, 96
    %v1625 = vpop.permute.xlu0 %1624
    %v1642 = vsel %vm719, %v1113, %v1275
    %v1643 = vsel %vm719, %v1114, %v1277
    %v1644 = vsel %vm719, %v1115, %v1279
    %v1645 = vsel %vm719, %v1116, %v1281
    %v1646 = vsel %vm719, %v1117, %v1283
    %v1647 = vsel %vm719, %v1118, %v1285
    %v1648 = vsel %vm719, %v1119, %v1287
    %v1649 = vsel %vm719, %v1120, %v1289
    %v1650 = vsel %vm719, %v1121, %v1291
    %v1651 = vsel %vm719, %v1122, %v1293
    %v1652 = vsel %vm719, %v1123, %v1295
    %v1653 = vsel %vm719, %v1124, %v1297
    %v1654 = vsel %vm719, %v1125, %v1299
    %v1655 = vsel %vm719, %v1126, %v1301
    %v1656 = vsel %vm719, %v1127, %v1303
    %v1657 = vsel %vm719, %v1128, %v1305
    %v1658 = vsel %vm753, %v1642, %v1339
    %v1659 = vsel %vm753, %v1643, %v1341
    %v1660 = vsel %vm753, %v1644, %v1343
    %v1661 = vsel %vm753, %v1645, %v1345
    %v1662 = vsel %vm753, %v1646, %v1347
    %v1663 = vsel %vm753, %v1647, %v1349
    %v1664 = vsel %vm753, %v1648, %v1351
    %v1665 = vsel %vm753, %v1649, %v1353
    %v1666 = vsel %vm753, %v1650, %v1355
    %v1667 = vsel %vm753, %v1651, %v1357
    %v1668 = vsel %vm753, %v1652, %v1359
    %v1669 = vsel %vm753, %v1653, %v1361
    %v1670 = vsel %vm753, %v1654, %v1363
    %v1671 = vsel %vm753, %v1655, %v1365
    %v1672 = vsel %vm753, %v1656, %v1367
    %v1673 = vsel %vm753, %v1657, %v1369
    %v1674 = vsel %vm787, %v1658, %v1403
    %v1675 = vsel %vm787, %v1659, %v1405
    %v1676 = vsel %vm787, %v1660, %v1407
    %v1677 = vsel %vm787, %v1661, %v1409
    %v1678 = vsel %vm787, %v1662, %v1411
    %v1679 = vsel %vm787, %v1663, %v1413
    %v1680 = vsel %vm787, %v1664, %v1415
    %v1681 = vsel %vm787, %v1665, %v1417
    %v1682 = vsel %vm787, %v1666, %v1419
    %v1683 = vsel %vm787, %v1667, %v1421
    %v1684 = vsel %vm787, %v1668, %v1423
    %v1685 = vsel %vm787, %v1669, %v1425
    %v1686 = vsel %vm787, %v1670, %v1427
    %v1687 = vsel %vm787, %v1671, %v1429
    %v1688 = vsel %vm787, %v1672, %v1431
    %v1689 = vsel %vm787, %v1673, %v1433
    %v1690 = vsel %vm719, %v1177, %v1467
    %v1691 = vsel %vm719, %v1178, %v1469
    %v1692 = vsel %vm719, %v1179, %v1471
    %v1693 = vsel %vm719, %v1180, %v1473
    %v1694 = vsel %vm719, %v1181, %v1475
    %v1695 = vsel %vm719, %v1182, %v1477
    %v1696 = vsel %vm719, %v1183, %v1479
    %v1697 = vsel %vm719, %v1184, %v1481
    %v1698 = vsel %vm719, %v1185, %v1483
    %v1699 = vsel %vm719, %v1186, %v1485
    %v1700 = vsel %vm719, %v1187, %v1487
    %v1701 = vsel %vm719, %v1188, %v1489
    %v1702 = vsel %vm719, %v1189, %v1491
    %v1703 = vsel %vm719, %v1190, %v1493
    %v1704 = vsel %vm719, %v1191, %v1495
    %v1705 = vsel %vm719, %v1192, %v1497
    %v1706 = vsel %vm753, %v1690, %v1531
    %v1707 = vsel %vm753, %v1691, %v1533
    %v1708 = vsel %vm753, %v1692, %v1535
    %v1709 = vsel %vm753, %v1693, %v1537
    %v1710 = vsel %vm753, %v1694, %v1539
    %v1711 = vsel %vm753, %v1695, %v1541
    %v1712 = vsel %vm753, %v1696, %v1543
    %v1713 = vsel %vm753, %v1697, %v1545
    %v1714 = vsel %vm753, %v1698, %v1547
    %v1715 = vsel %vm753, %v1699, %v1549
    %v1716 = vsel %vm753, %v1700, %v1551
    %v1717 = vsel %vm753, %v1701, %v1553
    %v1718 = vsel %vm753, %v1702, %v1555
    %v1719 = vsel %vm753, %v1703, %v1557
    %v1720 = vsel %vm753, %v1704, %v1559
    %v1721 = vsel %vm753, %v1705, %v1561
    %v1722 = vsel %vm787, %v1706, %v1595
    %v1723 = vsel %vm787, %v1707, %v1597
    %v1724 = vsel %vm787, %v1708, %v1599
    %v1725 = vsel %vm787, %v1709, %v1601
    %v1726 = vsel %vm787, %v1710, %v1603
    %v1727 = vsel %vm787, %v1711, %v1605
    %v1728 = vsel %vm787, %v1712, %v1607
    %v1729 = vsel %vm787, %v1713, %v1609
    %v1730 = vsel %vm787, %v1714, %v1611
    %v1731 = vsel %vm787, %v1715, %v1613
    %v1732 = vsel %vm787, %v1716, %v1615
    %v1733 = vsel %vm787, %v1717, %v1617
    %v1734 = vsel %vm787, %v1718, %v1619
    %v1735 = vsel %vm787, %v1719, %v1621
    %v1736 = vsel %vm787, %v1720, %v1623
    %v1737 = vsel %vm787, %v1721, %v1625
    %v1738 = vld [vmem:[#allocation4] sm:$0xff]
    %v1739 = vld [vmem:[#allocation4 + $0x8] sm:$0xff]
    %v1740 = vld [vmem:[#allocation4 + $0x10] sm:$0xff]
    %v1741 = vld [vmem:[#allocation4 + $0x18] sm:$0xff]
    %v1742 = vld [vmem:[#allocation4 + $0x20] sm:$0xff]
    %v1743 = vld [vmem:[#allocation4 + $0x28] sm:$0xff]
    %v1744 = vld [vmem:[#allocation4 + $0x30] sm:$0xff]
    %v1745 = vld [vmem:[#allocation4 + $0x38] sm:$0xff]
    %v1746 = vld [vmem:[#allocation4 + $0x40] sm:$0xff]
    %v1747 = vld [vmem:[#allocation4 + $0x48] sm:$0xff]
    %v1748 = vld [vmem:[#allocation4 + $0x50] sm:$0xff]
    %v1749 = vld [vmem:[#allocation4 + $0x58] sm:$0xff]
    %v1750 = vld [vmem:[#allocation4 + $0x60] sm:$0xff]
    %v1751 = vld [vmem:[#allocation4 + $0x68] sm:$0xff]
    %v1752 = vld [vmem:[#allocation4 + $0x70] sm:$0xff]
    %v1753 = vld [vmem:[#allocation4 + $0x78] sm:$0xff]
    %v1754 = vld [vmem:[#allocation4 + $0x80] sm:$0xff]
    %v1755 = vld [vmem:[#allocation4 + $0x88] sm:$0xff]
    %v1756 = vld [vmem:[#allocation4 + $0x90] sm:$0xff]
    %v1757 = vld [vmem:[#allocation4 + $0x98] sm:$0xff]
    %v1758 = vld [vmem:[#allocation4 + $0xa0] sm:$0xff]
    %v1759 = vld [vmem:[#allocation4 + $0xa8] sm:$0xff]
    %v1760 = vld [vmem:[#allocation4 + $0xb0] sm:$0xff]
    %v1761 = vld [vmem:[#allocation4 + $0xb8] sm:$0xff]
    %v1762 = vld [vmem:[#allocation4 + $0xc0] sm:$0xff]
    %v1763 = vld [vmem:[#allocation4 + $0xc8] sm:$0xff]
    %v1764 = vld [vmem:[#allocation4 + $0xd0] sm:$0xff]
    %v1765 = vld [vmem:[#allocation4 + $0xd8] sm:$0xff]
    %v1766 = vld [vmem:[#allocation4 + $0xe0] sm:$0xff]
    %v1767 = vld [vmem:[#allocation4 + $0xe8] sm:$0xff]
    %v1768 = vld [vmem:[#allocation4 + $0xf0] sm:$0xff]
    %v1769 = vld [vmem:[#allocation4 + $0xf8] sm:$0xff]
    %v1770 = vld [vmem:[#allocation4 + $0x100] sm:$0xff]
    %v1771 = vld [vmem:[#allocation4 + $0x108] sm:$0xff]
    %v1772 = vld [vmem:[#allocation4 + $0x110] sm:$0xff]
    %v1773 = vld [vmem:[#allocation4 + $0x118] sm:$0xff]
    %v1774 = vld [vmem:[%s4] sm:$0x1]
    %v1776 = vlaneseq
    %v1777 = vshrl.u32 %v1776, 7
    %v1778 = vsub.s32 0, %v1777
    %v1779 = vrot.slane %v1774, %v1778
    %v1782 = vsel %vm719, %v1242, 0
    %v1785 = vsel %vm719, %v1243, 0
    %v1788 = vsel %vm719, %v1244, 0
    %v1791 = vsel %vm719, %v1245, 0
    %v1794 = vsel %vm719, %v1246, 0
    %v1797 = vsel %vm719, %v1247, 0
    %v1800 = vsel %vm719, %v1248, 0
    %v1803 = vsel %vm719, %v1249, 0
    %v1806 = vsel %vm719, %v1250, 0
    %v1809 = vsel %vm719, %v1251, 0
    %v1812 = vsel %vm719, %v1252, 0
    %v1815 = vsel %vm719, %v1253, 0
    %v1818 = vsel %vm719, %v1254, 0
    %v1821 = vsel %vm719, %v1255, 0
    %v1824 = vsel %vm719, %v1256, 0
    %v1827 = vsel %vm719, %v1257, 0
    %1829 = vmatprep.subr.mxu0 0.0
    %1830 = vmatpush1.msra.mxu0 %v1738
    %1831 = vmatprep.subr.mxu0 0.0
    %1832 = vmatpush1.msra.mxu0 %v1739
    %1833 = vmatprep.subr.mxu0 0.0
    %1834 = vmatpush1.msra.mxu0 %v1740
    %1835 = vmatprep.subr.mxu0 0.0
    %1836 = vmatpush1.msra.mxu0 %v1741
    %1837 = vmatprep.subr.mxu0 0.0
    %1838 = vmatpush1.msra.mxu0 %v1742
    %1839 = vmatprep.subr.mxu0 0.0
    %1840 = vmatpush1.msra.mxu0 %v1743
    %1841 = vmatprep.subr.mxu0 0.0
    %1842 = vmatpush1.msra.mxu0 %v1744
    %1843 = vmatprep.subr.mxu0 0.0
    %1844 = vmatpush1.msra.mxu0 %v1745
    %1845 = vmatprep.subr.mxu0 0.0
    %1846 = vmatpush1.msra.mxu0 %v1746
    %1847 = vmatprep.subr.mxu0 0.0
    %1848 = vmatpush1.msra.mxu0 %v1747
    %1849 = vmatprep.subr.mxu0 0.0
    %1850 = vmatpush1.msra.mxu0 %v1748
    %1851 = vmatprep.subr.mxu0 0.0
    %1852 = vmatpush1.msra.mxu0 %v1749
    %1853 = vmatprep.subr.mxu0 0.0
    %1854 = vmatpush1.msra.mxu0 %v1750
    %1855 = vmatprep.subr.mxu0 0.0
    %1856 = vmatpush1.msra.mxu0 %v1751
    %1857 = vmatprep.subr.mxu0 0.0
    %1858 = vmatpush1.msra.mxu0 %v1752
    %1859 = vmatprep.subr.mxu0 0.0
    %1860 = vmatpush1.msra.mxu0 %v1753
    %1861 = vmatprep.subr.mxu0 0.0
    %1862 = vmatpush1.msra.mxu0 %v1754
    %1863 = vmatprep.subr.mxu0 0.0
    %1864 = vmatpush1.msra.mxu0 %v1755
    %1865 = vmatprep.subr.mxu0 0.0
    %1866 = vmatpush1.msra.mxu0 %v1756
    %1867 = vmatprep.subr.mxu0 0.0
    %1868 = vmatpush1.msra.mxu0 %v1757
    %1869 = vmatprep.subr.mxu0 0.0
    %1870 = vmatpush1.msra.mxu0 %v1758
    %1871 = vmatprep.subr.mxu0 0.0
    %1872 = vmatpush1.msra.mxu0 %v1759
    %1873 = vmatprep.subr.mxu0 0.0
    %1874 = vmatpush1.msra.mxu0 %v1760
    %1875 = vmatprep.subr.mxu0 0.0
    %1876 = vmatpush1.msra.mxu0 %v1761
    %1877 = vmatprep.subr.mxu0 0.0
    %1878 = vmatpush1.msra.mxu0 %v1762
    %1879 = vmatprep.subr.mxu0 0.0
    %1880 = vmatpush1.msra.mxu0 %v1763
    %1881 = vmatprep.subr.mxu0 0.0
    %1882 = vmatpush1.msra.mxu0 %v1764
    %1883 = vmatprep.subr.mxu0 0.0
    %1884 = vmatpush1.msra.mxu0 %v1765
    %1885 = vmatprep.subr.mxu0 0.0
    %1886 = vmatpush1.msra.mxu0 %v1766
    %1887 = vmatprep.subr.mxu0 0.0
    %1888 = vmatpush1.msra.mxu0 %v1767
    %1889 = vmatprep.subr.mxu0 0.0
    %1890 = vmatpush1.msra.mxu0 %v1768
    %1891 = vmatprep.subr.mxu0 0.0
    %1892 = vmatpush1.msra.mxu0 %v1769
    %1893 = vmatprep.mubr.f32.mxu0 %v1722
    %1894 = vmatmul.mubr.f32.gmra.mrb[0].mxu0 %v1674
    %v1895 = vpop.f32.mrb[0].mxu0
    %v1896 = vadd.f32 %v1779, %v1895
    %v1897 = vpop.f32.mrb[0].mxu0
    %1898 = vmatprep.mubr.f32.mxu0 %v1723
    %1899 = vmatmul.mubr.f32.gmra.mrb[0].mxu0 %v1675
    %v1900 = vpop.f32.mrb[0].mxu0
    %v1901 = vadd.f32 %v1779, %v1900
    %v1902 = vpop.f32.mrb[0].mxu0
    %1903 = vmatprep.mubr.f32.mxu0 %v1724
    %1904 = vmatmul.mubr.f32.gmra.mrb[0].mxu0 %v1676
    %v1905 = vpop.f32.mrb[0].mxu0
    %v1906 = vadd.f32 %v1779, %v1905
    %v1907 = vpop.f32.mrb[0].mxu0
    %1908 = vmatprep.mubr.f32.mxu0 %v1725
    %1909 = vmatmul.mubr.f32.gmra.mrb[0].mxu0 %v1677
    %v1910 = vpop.f32.mrb[0].mxu0
    %v1911 = vadd.f32 %v1779, %v1910
    %v1912 = vpop.f32.mrb[0].mxu0
    %1913 = vmatprep.mubr.f32.mxu0 %v1726
    %1914 = vmatmul.mubr.f32.gmra.mrb[0].mxu0 %v1678
    %v1915 = vpop.f32.mrb[0].mxu0
    %v1916 = vadd.f32 %v1779, %v1915
    %v1917 = vpop.f32.mrb[0].mxu0
    %1918 = vmatprep.mubr.f32.mxu0 %v1727
    %1919 = vmatmul.mubr.f32.gmra.mrb[0].mxu0 %v1679
    %v1920 = vpop.f32.mrb[0].mxu0
    %v1921 = vadd.f32 %v1779, %v1920
    %v1922 = vpop.f32.mrb[0].mxu0
    %1923 = vmatprep.mubr.f32.mxu0 %v1728
    %1924 = vmatmul.mubr.f32.gmra.mrb[0].mxu0 %v1680
    %v1925 = vpop.f32.mrb[0].mxu0
    %v1926 = vadd.f32 %v1779, %v1925
    %v1927 = vpop.f32.mrb[0].mxu0
    %1928 = vmatprep.mubr.f32.mxu0 %v1729
    %1929 = vmatmul.mubr.f32.gmra.mrb[0].mxu0 %v1681
    %v1930 = vpop.f32.mrb[0].mxu0
    %v1931 = vadd.f32 %v1779, %v1930
    %v1932 = vpop.f32.mrb[0].mxu0
    %1933 = vmatprep.mubr.f32.mxu0 %v1730
    %1934 = vmatmul.mubr.f32.gmra.mrb[0].mxu0 %v1682
    %v1935 = vpop.f32.mrb[0].mxu0
    %v1936 = vadd.f32 %v1779, %v1935
    %v1937 = vpop.f32.mrb[0].mxu0
    %1938 = vmatprep.mubr.f32.mxu0 %v1731
    %1939 = vmatmul.mubr.f32.gmra.mrb[0].mxu0 %v1683
    %v1940 = vpop.f32.mrb[0].mxu0
    %v1941 = vadd.f32 %v1779, %v1940
    %v1942 = vpop.f32.mrb[0].mxu0
    %1943 = vmatprep.mubr.f32.mxu0 %v1732
    %1944 = vmatmul.mubr.f32.gmra.mrb[0].mxu0 %v1684
    %v1945 = vpop.f32.mrb[0].mxu0
    %v1946 = vadd.f32 %v1779, %v1945
    %v1947 = vpop.f32.mrb[0].mxu0
    %1948 = vmatprep.mubr.f32.mxu0 %v1733
    %1949 = vmatmul.mubr.f32.gmra.mrb[0].mxu0 %v1685
    %v1950 = vpop.f32.mrb[0].mxu0
    %v1951 = vadd.f32 %v1779, %v1950
    %v1952 = vpop.f32.mrb[0].mxu0
    %1953 = vmatprep.mubr.f32.mxu0 %v1734
    %1954 = vmatmul.mubr.f32.gmra.mrb[0].mxu0 %v1686
    %v1955 = vpop.f32.mrb[0].mxu0
    %v1956 = vadd.f32 %v1779, %v1955
    %v1957 = vpop.f32.mrb[0].mxu0
    %1958 = vmatprep.mubr.f32.mxu0 %v1735
    %1959 = vmatmul.mubr.f32.gmra.mrb[0].mxu0 %v1687
    %v1960 = vpop.f32.mrb[0].mxu0
    %v1961 = vadd.f32 %v1779, %v1960
    %v1962 = vpop.f32.mrb[0].mxu0
    %1963 = vmatprep.mubr.f32.mxu0 %v1736
    %1964 = vmatmul.mubr.f32.gmra.mrb[0].mxu0 %v1688
    %v1965 = vpop.f32.mrb[0].mxu0
    %v1966 = vadd.f32 %v1779, %v1965
    %v1967 = vpop.f32.mrb[0].mxu0
    %1968 = vmatprep.mubr.f32.mxu0 %v1737
    %1969 = vmatmul.mubr.f32.gmra.mrb[0].mxu0 %v1689
    %v1970 = vpop.f32.mrb[0].mxu0
    %v1971 = vadd.f32 %v1779, %v1970
    %v1972 = vpop.f32.mrb[0].mxu0
    %1973 = vdwg.mxu0
    %1974 = vmatprep.subr.mxu0 0.0
    %1975 = vmatpush1.msra.mxu0 %v1770
    %1976 = vmatprep.subr.mxu0 0.0
    %1977 = vmatpush1.msra.mxu0 %v1771
    %1978 = vmatprep.subr.mxu0 0.0
    %1979 = vmatpush1.msra.mxu0 %v1772
    %1980 = vmatprep.subr.mxu0 0.0
    %1981 = vmatpush1.msra.mxu0 %v1773
    %1982 = vmatprep.subr.mxu0 0.0
    %1983 = vmatpush1.msra.mxu0 0.0
    %1984 = vmatprep.subr.mxu0 0.0
    %1985 = vmatpush1.msra.mxu0 0.0
    %1986 = vmatprep.subr.mxu0 0.0
    %1987 = vmatpush1.msra.mxu0 0.0
    %1988 = vmatprep.subr.mxu0 0.0
    %1989 = vmatpush1.msra.mxu0 0.0
    %1990 = vmatprep.subr.mxu0 0.0
    %1991 = vmatpush1.msra.mxu0 0.0
    %1992 = vmatprep.subr.mxu0 0.0
    %1993 = vmatpush1.msra.mxu0 0.0
    %1994 = vmatprep.subr.mxu0 0.0
    %1995 = vmatpush1.msra.mxu0 0.0
    %1996 = vmatprep.subr.mxu0 0.0
    %1997 = vmatpush1.msra.mxu0 0.0
    %1998 = vmatprep.subr.mxu0 0.0
    %1999 = vmatpush1.msra.mxu0 0.0
    %2000 = vmatprep.subr.mxu0 0.0
    %2001 = vmatpush1.msra.mxu0 0.0
    %2002 = vmatprep.subr.mxu0 0.0
    %2003 = vmatpush1.msra.mxu0 0.0
    %2004 = vmatprep.subr.mxu0 0.0
    %2005 = vmatpush1.msra.mxu0 0.0
    %2006 = vmatprep.subr.mxu0 0.0
    %2007 = vmatpush1.msra.mxu0 0.0
    %2008 = vmatprep.subr.mxu0 0.0
    %2009 = vmatpush1.msra.mxu0 0.0
    %2010 = vmatprep.subr.mxu0 0.0
    %2011 = vmatpush1.msra.mxu0 0.0
    %2012 = vmatprep.subr.mxu0 0.0
    %2013 = vmatpush1.msra.mxu0 0.0
    %2014 = vmatprep.subr.mxu0 0.0
    %2015 = vmatpush1.msra.mxu0 0.0
    %2016 = vmatprep.subr.mxu0 0.0
    %2017 = vmatpush1.msra.mxu0 0.0
    %2018 = vmatprep.subr.mxu0 0.0
    %2019 = vmatpush1.msra.mxu0 0.0
    %2020 = vmatprep.subr.mxu0 0.0
    %2021 = vmatpush1.msra.mxu0 0.0
    %2022 = vmatprep.subr.mxu0 0.0
    %2023 = vmatpush1.msra.mxu0 0.0
    %2024 = vmatprep.subr.mxu0 0.0
    %2025 = vmatpush1.msra.mxu0 0.0
    %2026 = vmatprep.subr.mxu0 0.0
    %2027 = vmatpush1.msra.mxu0 0.0
    %2028 = vmatprep.subr.mxu0 0.0
    %2029 = vmatpush1.msra.mxu0 0.0
    %2030 = vmatprep.subr.mxu0 0.0
    %2031 = vmatpush1.msra.mxu0 0.0
    %2032 = vmatprep.subr.mxu0 0.0
    %2033 = vmatpush1.msra.mxu0 0.0
    %2034 = vmatprep.subr.mxu0 0.0
    %2035 = vmatpush1.msra.mxu0 0.0
    %2036 = vmatprep.subr.mxu0 0.0
    %2037 = vmatpush1.msra.mxu0 0.0
    %2038 = vmatprep.mubr.f32.mxu0 0.0
    %2039 = vmatmul.mubr.f32.gmra.mrb[0].mxu0 %v1782
    %v2040 = vpop.f32.mrb[0].mxu0
    %v2041 = vadd.f32 %v1896, %v2040
    %v2042 = vpop.f32.mrb[0].mxu0
    %2043 = vmatprep.mubr.f32.mxu0 0.0
    %2044 = vmatmul.mubr.f32.gmra.mrb[0].mxu0 %v1785
    %v2045 = vpop.f32.mrb[0].mxu0
    %v2046 = vadd.f32 %v1901, %v2045
    %v2047 = vpop.f32.mrb[0].mxu0
    %2048 = vmatprep.mubr.f32.mxu0 0.0
    %2049 = vmatmul.mubr.f32.gmra.mrb[0].mxu0 %v1788
    %v2050 = vpop.f32.mrb[0].mxu0
    %v2051 = vadd.f32 %v1906, %v2050
    %v2052 = vpop.f32.mrb[0].mxu0
    %2053 = vmatprep.mubr.f32.mxu0 0.0
    %2054 = vmatmul.mubr.f32.gmra.mrb[0].mxu0 %v1791
    %v2055 = vpop.f32.mrb[0].mxu0
    %v2056 = vadd.f32 %v1911, %v2055
    %v2057 = vpop.f32.mrb[0].mxu0
    %2058 = vmatprep.mubr.f32.mxu0 0.0
    %2059 = vmatmul.mubr.f32.gmra.mrb[0].mxu0 %v1794
    %v2060 = vpop.f32.mrb[0].mxu0
    %v2061 = vadd.f32 %v1916, %v2060
    %v2062 = vpop.f32.mrb[0].mxu0
    %2063 = vmatprep.mubr.f32.mxu0 0.0
    %2064 = vmatmul.mubr.f32.gmra.mrb[0].mxu0 %v1797
    %v2065 = vpop.f32.mrb[0].mxu0
    %v2066 = vadd.f32 %v1921, %v2065
    %v2067 = vpop.f32.mrb[0].mxu0
    %2068 = vmatprep.mubr.f32.mxu0 0.0
    %2069 = vmatmul.mubr.f32.gmra.mrb[0].mxu0 %v1800
    %v2070 = vpop.f32.mrb[0].mxu0
    %v2071 = vadd.f32 %v1926, %v2070
    %v2072 = vpop.f32.mrb[0].mxu0
    %2073 = vmatprep.mubr.f32.mxu0 0.0
    %2074 = vmatmul.mubr.f32.gmra.mrb[0].mxu0 %v1803
    %v2075 = vpop.f32.mrb[0].mxu0
    %v2076 = vadd.f32 %v1931, %v2075
    %v2077 = vpop.f32.mrb[0].mxu0
    %2078 = vmatprep.mubr.f32.mxu0 0.0
    %2079 = vmatmul.mubr.f32.gmra.mrb[0].mxu0 %v1806
    %v2080 = vpop.f32.mrb[0].mxu0
    %v2081 = vadd.f32 %v1936, %v2080
    %v2082 = vpop.f32.mrb[0].mxu0
    %2083 = vmatprep.mubr.f32.mxu0 0.0
    %2084 = vmatmul.mubr.f32.gmra.mrb[0].mxu0 %v1809
    %v2085 = vpop.f32.mrb[0].mxu0
    %v2086 = vadd.f32 %v1941, %v2085
    %v2087 = vpop.f32.mrb[0].mxu0
    %2088 = vmatprep.mubr.f32.mxu0 0.0
    %2089 = vmatmul.mubr.f32.gmra.mrb[0].mxu0 %v1812
    %v2090 = vpop.f32.mrb[0].mxu0
    %v2091 = vadd.f32 %v1946, %v2090
    %v2092 = vpop.f32.mrb[0].mxu0
    %2093 = vmatprep.mubr.f32.mxu0 0.0
    %2094 = vmatmul.mubr.f32.gmra.mrb[0].mxu0 %v1815
    %v2095 = vpop.f32.mrb[0].mxu0
    %v2096 = vadd.f32 %v1951, %v2095
    %v2097 = vpop.f32.mrb[0].mxu0
    %2098 = vmatprep.mubr.f32.mxu0 0.0
    %2099 = vmatmul.mubr.f32.gmra.mrb[0].mxu0 %v1818
    %v2100 = vpop.f32.mrb[0].mxu0
    %v2101 = vadd.f32 %v1956, %v2100
    %v2102 = vpop.f32.mrb[0].mxu0
    %2103 = vmatprep.mubr.f32.mxu0 0.0
    %2104 = vmatmul.mubr.f32.gmra.mrb[0].mxu0 %v1821
    %v2105 = vpop.f32.mrb[0].mxu0
    %v2106 = vadd.f32 %v1961, %v2105
    %v2107 = vpop.f32.mrb[0].mxu0
    %2108 = vmatprep.mubr.f32.mxu0 0.0
    %2109 = vmatmul.mubr.f32.gmra.mrb[0].mxu0 %v1824
    %v2110 = vpop.f32.mrb[0].mxu0
    %v2111 = vadd.f32 %v1966, %v2110
    %v2112 = vpop.f32.mrb[0].mxu0
    %2113 = vmatprep.mubr.f32.mxu0 0.0
    %2114 = vmatmul.mubr.f32.gmra.mrb[0].mxu0 %v1827
    %v2115 = vpop.f32.mrb[0].mxu0
    %v2116 = vadd.f32 %v1971, %v2115
    %v2117 = vpop.f32.mrb[0].mxu0
    %2118 = vdwg.mxu0
    %v2119 = vlaneseq
    %v2120 = vand.u32 %v2119, 127
    %vm2121 = vcmp.ge.s32.totalorder %v2120, 27
    %vm2122 = vcmp.lt.s32.totalorder %v2120, 51
    %vm2123 = vmand %vm2121, %vm2122
    %v2124 = vtanh.pop %v2041
    %v2125 = vtanh.pop %v2046
    %v2126 = vtanh.pop %v2051
    %v2127 = vtanh.pop %v2056
    %v2128 = vtanh.pop %v2061
    %v2129 = vtanh.pop %v2066
    %v2130 = vtanh.pop %v2071
    %v2131 = vtanh.pop %v2076
    %v2132 = vtanh.pop %v2081
    %v2133 = vtanh.pop %v2086
    %v2134 = vtanh.pop %v2091
    %v2135 = vtanh.pop %v2096
    %v2136 = vtanh.pop %v2101
    %v2137 = vtanh.pop %v2106
    %v2138 = vtanh.pop %v2111
    %v2139 = vtanh.pop %v2116
    %v2140 = vsel %vm2123, %v2124, %v2041
    %v2141 = vsel %vm2123, %v2125, %v2046
    %v2142 = vsel %vm2123, %v2126, %v2051
    %v2143 = vsel %vm2123, %v2127, %v2056
    %v2144 = vsel %vm2123, %v2128, %v2061
    %v2145 = vsel %vm2123, %v2129, %v2066
    %v2146 = vsel %vm2123, %v2130, %v2071
    %v2147 = vsel %vm2123, %v2131, %v2076
    %v2148 = vsel %vm2123, %v2132, %v2081
    %v2149 = vsel %vm2123, %v2133, %v2086
    %v2150 = vsel %vm2123, %v2134, %v2091
    %v2151 = vsel %vm2123, %v2135, %v2096
    %v2152 = vsel %vm2123, %v2136, %v2101
    %v2153 = vsel %vm2123, %v2137, %v2106
    %v2154 = vsel %vm2123, %v2138, %v2111
    %v2155 = vsel %vm2123, %v2139, %v2116
    %2156 = vst [vmem:[#allocation7] sm:$0xff] %v2140
    %2157 = vst [vmem:[#allocation7 + $0x8] sm:$0xff] %v2141
    %2158 = vst [vmem:[#allocation7 + $0x10] sm:$0xff] %v2142
    %2159 = vst [vmem:[#allocation7 + $0x18] sm:$0xff] %v2143
    %2160 = vst [vmem:[#allocation7 + $0x20] sm:$0xff] %v2144
    %2161 = vst [vmem:[#allocation7 + $0x28] sm:$0xff] %v2145
    %2162 = vst [vmem:[#allocation7 + $0x30] sm:$0xff] %v2146
    %2163 = vst [vmem:[#allocation7 + $0x38] sm:$0xff] %v2147
    %2164 = vst [vmem:[#allocation7 + $0x40] sm:$0xff] %v2148
    %2165 = vst [vmem:[#allocation7 + $0x48] sm:$0xff] %v2149
    %2166 = vst [vmem:[#allocation7 + $0x50] sm:$0xff] %v2150
    %2167 = vst [vmem:[#allocation7 + $0x58] sm:$0xff] %v2151
    %2168 = vst [vmem:[#allocation7 + $0x60] sm:$0xff] %v2152
    %2169 = vst [vmem:[#allocation7 + $0x68] sm:$0xff] %v2153
    %2170 = vst [vmem:[#allocation7 + $0x70] sm:$0xff] %v2154
    %2171 = vst [vmem:[#allocation7 + $0x78] sm:$0xff] %v2155
    // Predicated region
    $region26: #{tpu_custom_call.1} parent=1 // pred_check
      _
    $region27: #{tpu_custom_call.1} parent=1 // pred_check_branch
      %2173 = sbr.rel (0) target = $region29
    $region28: #{tpu_custom_call.1} parent=1 // pred_region
      %s2175 = ssub.s32 2048, 2048
      %2176 = vsyncadd [#allocation6], %s2175
      %s2177 = sshll.u32 [#allocation7], 4
      %s2178 = int_to_ptr.vmem [resolvable:$true] %s2177
      %2183 = dma.vmem_to_hbm [thread:$0]  %s2178, 2048, %s5, [#allocation6], 128, 128, 8
    $region29: #{tpu_custom_call.1} parent=1 // pred_fallthru
      _
    // Predicated region
    $region30: #{tpu_custom_call.1} parent=1 // pred_check
      _
    $region31: #{tpu_custom_call.1} parent=1 // pred_check_branch
      %2185 = sbr.rel (0) target = $region33
    $region32: #{tpu_custom_call.1} parent=1 // pred_region
      %2186 = dma.done [#allocation6], 2048
    $region33: #{tpu_custom_call.1} parent=1 // pred_fallthru
      _
    %2187 = vsyncpa [#allocation5], 1
    %2188 = vsyncpa [#allocation6], 1

</llo_original>
